<compile_context>
chip_gen: v5e
topology: v5e:2x2
jax: 0.10.0
libtpu: 0.0.40
codegen_flags: <defaults>
</compile_context>

<pallas_src>
import jax
import jax.numpy as jnp
from jax import lax
from jax.experimental import pallas as pl
from jax.experimental.pallas import tpu as pltpu

N_ROWS = 5    # Linear out-features == rows of weight (x's dim -2)
N_IN = 4      # Linear in-features
N_FEAT = N_ROWS * N_IN
K_TOP = 3
LANES = 128


def _mymodule_kernel(x_ref, w_ref, c_ref, vals_ref, idx_ref):
    # x_ref   : (20, TBS, 128) f32 VMEM; row r = n*4 + d holds x[batch, n, d] for a
    #           (TBS*128)-wide slab of batch elements (batch packed into sublanes+lanes).
    # w_ref   : (5, 4) f32 SMEM  (linear weight, read as broadcast scalars)
    # c_ref   : (5, 5) f32 SMEM  (= W @ W.T + b, pre-folded constant)
    # vals_ref: (3, TBS, 128) f32
    # idx_ref : (3, TBS, 128) i32
    tbs = x_ref.shape[1]
    chunk = 8 if tbs % 8 == 0 else tbs      # 8-sublane chunks keep vreg pressure ~15 regs
    num_chunks = tbs // chunk

    def process(off):
        shape = (chunk, LANES)
        neg = jnp.full(shape, -3.0e38, jnp.float32)   # s >= 0 (sum of relus) -> never wins
        v0, v1, v2 = neg, neg, neg
        zero_i = jnp.zeros(shape, jnp.int32)
        i0, i1, i2 = zero_i, zero_i, zero_i

        for n in range(N_ROWS):
            # s_n = sum_m relu( sum_d x[n,d] * W[m,d] + C[n,m] )  -- pure VPU, unrolled.
            xn = [x_ref[n * N_IN + d, pl.ds(off, chunk), :] for d in range(N_IN)]
            s_n = None
            for m in range(N_ROWS):
                h = xn[0] * w_ref[m, 0]
                for d in range(1, N_IN):
                    h = h + xn[d] * w_ref[m, d]
                h = jnp.maximum(h + c_ref[n, m], 0.0)
                s_n = h if s_n is None else s_n + h

            # Insert candidate (s_n, n) into the running sorted top-3.
            # Strict '>' => an equal later candidate never displaces an earlier one
            # (first-index tie-break, matching torch.topk / lax.top_k).
            ni = jnp.int32(n)
            gt0 = s_n > v0
            gt1 = s_n > v1
            gt2 = s_n > v2
            v2 = jnp.where(gt1, v1, jnp.where(gt2, s_n, v2))
            i2 = jnp.where(gt1, i1, jnp.where(gt2, ni, i2))
            v1 = jnp.where(gt0, v0, jnp.where(gt1, s_n, v1))
            i1 = jnp.where(gt0, i0, jnp.where(gt1, ni, i1))
            v0 = jnp.where(gt0, s_n, v0)
            i0 = jnp.where(gt0, ni, i0)

        # Row-wise, lane-dense stores.
        vals_ref[0, pl.ds(off, chunk), :] = v0
        vals_ref[1, pl.ds(off, chunk), :] = v1
        vals_ref[2, pl.ds(off, chunk), :] = v2
        idx_ref[0, pl.ds(off, chunk), :] = i0
        idx_ref[1, pl.ds(off, chunk), :] = i1
        idx_ref[2, pl.ds(off, chunk), :] = i2

    if num_chunks == 1:
        process(0)
    else:
        @pl.loop(0, num_chunks)
        def _(j):
            process(pl.multiple_of(j * chunk, chunk))


def _choose_tiling(batch, block_groups):
    """Returns (groups_pad, tbs): padded #lane-groups and the sublane-group tile size."""
    groups = pl.cdiv(batch, LANES)
    if groups <= 8:
        # Single grid step; block second-to-last dim == full array dim -> always legal.
        return groups, groups
    bg = max(8, (block_groups // 8) * 8)          # legality: TBS must be a multiple of 8
    groups8 = pl.cdiv(groups, 8) * 8
    tbs = min(bg, groups8)
    if groups8 >= 16:
        # Keep >= 2 grid steps so dimension_semantics=("parallel",) can use both v7x TCs.
        tbs = min(tbs, max(8, (groups8 // 2) // 8 * 8))
    groups_pad = pl.cdiv(groups8, tbs) * tbs
    return groups_pad, tbs


def mymodule_forward(x, weight, bias, *, block_groups=256):
    """x: (B, 5, 4) f32; weight: (5, 4) f32; bias: (5,) f32.
    Returns (topk values (B, 3) f32, topk indices (B, 3) int32).

    block_groups: max sublane-group tile (multiple of 8). 256 fits v5e's 16 MiB scoped
    VMEM with double buffering; 512 is fine on v6e/v7x if vmem_limit is raised.
    Producers that can emit x in feature-major (20, B) layout should do so upstream to
    avoid the single pad/reshape/transpose pass this wrapper performs.
    """
    B = x.shape[0]
    assert x.shape[1:] == (N_ROWS, N_IN)

    # Fold the data-independent part of the linear layer: C = W @ W.T + b  (5x5).
    c = weight @ weight.T + bias[None, :]

    groups_pad, tbs = _choose_tiling(B, block_groups)
    b_pad = groups_pad * LANES

    # ---- batch-in-lanes layout: (B, 5, 4) -> (20, G, 128), zero-padded batch ----
    x2 = x.reshape(B, N_FEAT)
    if b_pad != B:
        x2 = jnp.pad(x2, ((0, b_pad - B), (0, 0)))
    xt = x2.reshape(groups_pad, LANES, N_FEAT).transpose(2, 0, 1)   # (20, G, 128)

    grid = (groups_pad // tbs,)
    smem = pl.BlockSpec(memory_space=pltpu.MemorySpace.SMEM)

    vals_t, idx_t = pl.pallas_call(
        _mymodule_kernel,
        out_shape=(
            jax.ShapeDtypeStruct((K_TOP, groups_pad, LANES), jnp.float32),
            jax.ShapeDtypeStruct((K_TOP, groups_pad, LANES), jnp.int32),
        ),
        grid=grid,
        in_specs=[
            pl.BlockSpec((N_FEAT, tbs, LANES), lambda i: (0, i, 0)),
            smem,   # weight (5, 4)
            smem,   # folded constant C (5, 5)
        ],
        out_specs=(
            pl.BlockSpec((K_TOP, tbs, LANES), lambda i: (0, i, 0)),
            pl.BlockSpec((K_TOP, tbs, LANES), lambda i: (0, i, 0)),
        ),
        compiler_params=pltpu.CompilerParams(
            dimension_semantics=("parallel",)),      # v7x: shard grid over both TCs
    )(xt, weight, c)

    vals = vals_t.transpose(1, 2, 0).reshape(b_pad, K_TOP)[:B]
    idx = idx_t.transpose(1, 2, 0).reshape(b_pad, K_TOP)[:B]
    return vals, idx


def _reference(x, weight, bias):
    h = (x + weight[None, :, :]) @ weight.T + bias[None, None, :]
    h = jnp.maximum(h, 0.0)
    s = jnp.sum(h, axis=-1)
    vals, idx = lax.top_k(s, K_TOP)
    return s, vals, idx


def _check(x, weight, bias, vals, idx, *, check_exact_idx=False):
    s, ref_vals, ref_idx = _reference(x, weight, bias)
    assert jnp.allclose(vals, ref_vals, atol=1e-5, rtol=1e-5)
    # Robust index check: the selected entries must carry the top-k values
    # (immune to index flips on numerically near-tied candidates).
    gathered = jnp.take_along_axis(s, idx.astype(jnp.int32), axis=-1)
    assert jnp.allclose(gathered, ref_vals, atol=1e-5, rtol=1e-5)
    if check_exact_idx:
        assert jnp.array_equal(idx, ref_idx.astype(jnp.int32))


if __name__ == "__main__":
    key = jax.random.PRNGKey(0)
    k_param, k_w, k_b, k_x, k_x2, k_x3 = jax.random.split(key, 6)

    # Parameters mirroring the module's __init__ (self.param is unused in forward).
    _param = jax.random.uniform(k_param, (3, 4), jnp.float32)
    # torch.nn.Linear(4, 5): weight (5, 4), bias (5,)
    bound = 1.0 / jnp.sqrt(4.0)
    weight = jax.random.uniform(k_w, (5, 4), jnp.float32, -bound, bound)
    bias = jax.random.uniform(k_b, (5,), jnp.float32, -bound, bound)

    fwd = jax.jit(mymodule_forward, static_argnames=("block_groups",))

    # Primary small case: batch=2 -> (2, 5, 4); single grid step, full-dim block.
    x = jax.random.normal(k_x, (2, 5, 4), jnp.float32)
    vals, idx = jax.block_until_ready(fwd(x, weight, bias))
    _check(x, weight, bias, vals, idx, check_exact_idx=True)

    # Batch padding, single-step grid with a non-multiple-of-8 (full-dim) block.
    x_med = jax.random.normal(k_x2, (300, 5, 4), jnp.float32)
    vals_m, idx_m = jax.block_until_ready(fwd(x_med, weight, bias))
    _check(x_med, weight, bias, vals_m, idx_m)

    # Multi-step pipelined grid + in-kernel 8-sublane chunk loop + batch padding.
    x_big = jax.random.normal(k_x3, (5000, 5, 4), jnp.float32)
    vals_b, idx_b = jax.block_until_ready(fwd(x_big, weight, bias, block_groups=16))
    _check(x_big, weight, bias, vals_b, idx_b)

    print("KERNEL_OK")
</pallas_src>

<mosaic_0001>
module attributes {stable_mosaic.version = 11 : i64} {
  func.func @_mymodule_kernel(%arg0: i32, %arg1: memref<20x1x128xf32, #tpu.memory_space<vmem>>, %arg2: memref<5x4xf32, #tpu.memory_space<smem>>, %arg3: memref<5x5xf32, #tpu.memory_space<smem>>, %arg4: memref<3x1x128xf32, #tpu.memory_space<vmem>>, %arg5: memref<3x1x128xi32, #tpu.memory_space<vmem>>) attributes {dimension_semantics = [#tpu.dimension_semantics<parallel>], iteration_bounds = array<i64: 1>, scalar_prefetch = 0 : i64, scratch_operands = 0 : i64, tpu.core_type = #tpu.core_type<tc>, window_params = [{transform_indices = @transform_0, window_bounds = array<i64: 20, 1, 128>}, {transform_indices = @transform_1, window_bounds = array<i64: 5, 4>}, {transform_indices = @transform_2, window_bounds = array<i64: 5, 5>}, {transform_indices = @transform_3, window_bounds = array<i64: 3, 1, 128>}, {transform_indices = @transform_4, window_bounds = array<i64: 3, 1, 128>}]} {
    %cst = arith.constant -3.000000e+38 : f32
    %0 = vector.broadcast %cst : f32 to vector<1x128xf32>
    %c0_i32 = arith.constant 0 : i32
    %1 = vector.broadcast %c0_i32 : i32 to vector<1x128xi32>
    %c0 = arith.constant 0 : index
    %c0_0 = arith.constant 0 : index
    %c0_1 = arith.constant 0 : index
    %2 = vector.load %arg1[%c0, %c0_0, %c0_1] : memref<20x1x128xf32, #tpu.memory_space<vmem>>, vector<1x1x128xf32>
    %3 = vector.shape_cast %2 : vector<1x1x128xf32> to vector<1x128xf32>
    %c1 = arith.constant 1 : index
    %c0_2 = arith.constant 0 : index
    %c0_3 = arith.constant 0 : index
    %4 = vector.load %arg1[%c1, %c0_2, %c0_3] : memref<20x1x128xf32, #tpu.memory_space<vmem>>, vector<1x1x128xf32>
    %5 = vector.shape_cast %4 : vector<1x1x128xf32> to vector<1x128xf32>
    %c2 = arith.constant 2 : index
    %c0_4 = arith.constant 0 : index
    %c0_5 = arith.constant 0 : index
    %6 = vector.load %arg1[%c2, %c0_4, %c0_5] : memref<20x1x128xf32, #tpu.memory_space<vmem>>, vector<1x1x128xf32>
    %7 = vector.shape_cast %6 : vector<1x1x128xf32> to vector<1x128xf32>
    %c3 = arith.constant 3 : index
    %c0_6 = arith.constant 0 : index
    %c0_7 = arith.constant 0 : index
    %8 = vector.load %arg1[%c3, %c0_6, %c0_7] : memref<20x1x128xf32, #tpu.memory_space<vmem>>, vector<1x1x128xf32>
    %9 = vector.shape_cast %8 : vector<1x1x128xf32> to vector<1x128xf32>
    %c0_8 = arith.constant 0 : index
    %c0_9 = arith.constant 0 : index
    %10 = memref.load %arg2[%c0_8, %c0_9] : memref<5x4xf32, #tpu.memory_space<smem>>
    %11 = vector.broadcast %10 : f32 to vector<1x128xf32>
    %12 = arith.mulf %3, %11 : vector<1x128xf32>
    %c0_10 = arith.constant 0 : index
    %c1_11 = arith.constant 1 : index
    %13 = memref.load %arg2[%c0_10, %c1_11] : memref<5x4xf32, #tpu.memory_space<smem>>
    %14 = vector.broadcast %13 : f32 to vector<1x128xf32>
    %15 = arith.mulf %5, %14 : vector<1x128xf32>
    %16 = arith.addf %12, %15 : vector<1x128xf32>
    %c0_12 = arith.constant 0 : index
    %c2_13 = arith.constant 2 : index
    %17 = memref.load %arg2[%c0_12, %c2_13] : memref<5x4xf32, #tpu.memory_space<smem>>
    %18 = vector.broadcast %17 : f32 to vector<1x128xf32>
    %19 = arith.mulf %7, %18 : vector<1x128xf32>
    %20 = arith.addf %16, %19 : vector<1x128xf32>
    %c0_14 = arith.constant 0 : index
    %c3_15 = arith.constant 3 : index
    %21 = memref.load %arg2[%c0_14, %c3_15] : memref<5x4xf32, #tpu.memory_space<smem>>
    %22 = vector.broadcast %21 : f32 to vector<1x128xf32>
    %23 = arith.mulf %9, %22 : vector<1x128xf32>
    %24 = arith.addf %20, %23 : vector<1x128xf32>
    %c0_16 = arith.constant 0 : index
    %c0_17 = arith.constant 0 : index
    %25 = memref.load %arg3[%c0_16, %c0_17] : memref<5x5xf32, #tpu.memory_space<smem>>
    %26 = vector.broadcast %25 : f32 to vector<1x128xf32>
    %27 = arith.addf %24, %26 : vector<1x128xf32>
    %cst_18 = arith.constant 0.000000e+00 : f32
    %28 = vector.broadcast %cst_18 : f32 to vector<1x128xf32>
    %29 = arith.maximumf %27, %28 : vector<1x128xf32>
    %c1_19 = arith.constant 1 : index
    %c0_20 = arith.constant 0 : index
    %30 = memref.load %arg2[%c1_19, %c0_20] : memref<5x4xf32, #tpu.memory_space<smem>>
    %31 = vector.broadcast %30 : f32 to vector<1x128xf32>
    %32 = arith.mulf %3, %31 : vector<1x128xf32>
    %c1_21 = arith.constant 1 : index
    %c1_22 = arith.constant 1 : index
    %33 = memref.load %arg2[%c1_21, %c1_22] : memref<5x4xf32, #tpu.memory_space<smem>>
    %34 = vector.broadcast %33 : f32 to vector<1x128xf32>
    %35 = arith.mulf %5, %34 : vector<1x128xf32>
    %36 = arith.addf %32, %35 : vector<1x128xf32>
    %c1_23 = arith.constant 1 : index
    %c2_24 = arith.constant 2 : index
    %37 = memref.load %arg2[%c1_23, %c2_24] : memref<5x4xf32, #tpu.memory_space<smem>>
    %38 = vector.broadcast %37 : f32 to vector<1x128xf32>
    %39 = arith.mulf %7, %38 : vector<1x128xf32>
    %40 = arith.addf %36, %39 : vector<1x128xf32>
    %c1_25 = arith.constant 1 : index
    %c3_26 = arith.constant 3 : index
    %41 = memref.load %arg2[%c1_25, %c3_26] : memref<5x4xf32, #tpu.memory_space<smem>>
    %42 = vector.broadcast %41 : f32 to vector<1x128xf32>
    %43 = arith.mulf %9, %42 : vector<1x128xf32>
    %44 = arith.addf %40, %43 : vector<1x128xf32>
    %c0_27 = arith.constant 0 : index
    %c1_28 = arith.constant 1 : index
    %45 = memref.load %arg3[%c0_27, %c1_28] : memref<5x5xf32, #tpu.memory_space<smem>>
    %46 = vector.broadcast %45 : f32 to vector<1x128xf32>
    %47 = arith.addf %44, %46 : vector<1x128xf32>
    %cst_29 = arith.constant 0.000000e+00 : f32
    %48 = vector.broadcast %cst_29 : f32 to vector<1x128xf32>
    %49 = arith.maximumf %47, %48 : vector<1x128xf32>
    %50 = arith.addf %29, %49 : vector<1x128xf32>
    %c2_30 = arith.constant 2 : index
    %c0_31 = arith.constant 0 : index
    %51 = memref.load %arg2[%c2_30, %c0_31] : memref<5x4xf32, #tpu.memory_space<smem>>
    %52 = vector.broadcast %51 : f32 to vector<1x128xf32>
    %53 = arith.mulf %3, %52 : vector<1x128xf32>
    %c2_32 = arith.constant 2 : index
    %c1_33 = arith.constant 1 : index
    %54 = memref.load %arg2[%c2_32, %c1_33] : memref<5x4xf32, #tpu.memory_space<smem>>
    %55 = vector.broadcast %54 : f32 to vector<1x128xf32>
    %56 = arith.mulf %5, %55 : vector<1x128xf32>
    %57 = arith.addf %53, %56 : vector<1x128xf32>
    %c2_34 = arith.constant 2 : index
    %c2_35 = arith.constant 2 : index
    %58 = memref.load %arg2[%c2_34, %c2_35] : memref<5x4xf32, #tpu.memory_space<smem>>
    %59 = vector.broadcast %58 : f32 to vector<1x128xf32>
    %60 = arith.mulf %7, %59 : vector<1x128xf32>
    %61 = arith.addf %57, %60 : vector<1x128xf32>
    %c2_36 = arith.constant 2 : index
    %c3_37 = arith.constant 3 : index
    %62 = memref.load %arg2[%c2_36, %c3_37] : memref<5x4xf32, #tpu.memory_space<smem>>
    %63 = vector.broadcast %62 : f32 to vector<1x128xf32>
    %64 = arith.mulf %9, %63 : vector<1x128xf32>
    %65 = arith.addf %61, %64 : vector<1x128xf32>
    %c0_38 = arith.constant 0 : index
    %c2_39 = arith.constant 2 : index
    %66 = memref.load %arg3[%c0_38, %c2_39] : memref<5x5xf32, #tpu.memory_space<smem>>
    %67 = vector.broadcast %66 : f32 to vector<1x128xf32>
    %68 = arith.addf %65, %67 : vector<1x128xf32>
    %cst_40 = arith.constant 0.000000e+00 : f32
    %69 = vector.broadcast %cst_40 : f32 to vector<1x128xf32>
    %70 = arith.maximumf %68, %69 : vector<1x128xf32>
    %71 = arith.addf %50, %70 : vector<1x128xf32>
    %c3_41 = arith.constant 3 : index
    %c0_42 = arith.constant 0 : index
    %72 = memref.load %arg2[%c3_41, %c0_42] : memref<5x4xf32, #tpu.memory_space<smem>>
    %73 = vector.broadcast %72 : f32 to vector<1x128xf32>
    %74 = arith.mulf %3, %73 : vector<1x128xf32>
    %c3_43 = arith.constant 3 : index
    %c1_44 = arith.constant 1 : index
    %75 = memref.load %arg2[%c3_43, %c1_44] : memref<5x4xf32, #tpu.memory_space<smem>>
    %76 = vector.broadcast %75 : f32 to vector<1x128xf32>
    %77 = arith.mulf %5, %76 : vector<1x128xf32>
    %78 = arith.addf %74, %77 : vector<1x128xf32>
    %c3_45 = arith.constant 3 : index
    %c2_46 = arith.constant 2 : index
    %79 = memref.load %arg2[%c3_45, %c2_46] : memref<5x4xf32, #tpu.memory_space<smem>>
    %80 = vector.broadcast %79 : f32 to vector<1x128xf32>
    %81 = arith.mulf %7, %80 : vector<1x128xf32>
    %82 = arith.addf %78, %81 : vector<1x128xf32>
    %c3_47 = arith.constant 3 : index
    %c3_48 = arith.constant 3 : index
    %83 = memref.load %arg2[%c3_47, %c3_48] : memref<5x4xf32, #tpu.memory_space<smem>>
    %84 = vector.broadcast %83 : f32 to vector<1x128xf32>
    %85 = arith.mulf %9, %84 : vector<1x128xf32>
    %86 = arith.addf %82, %85 : vector<1x128xf32>
    %c0_49 = arith.constant 0 : index
    %c3_50 = arith.constant 3 : index
    %87 = memref.load %arg3[%c0_49, %c3_50] : memref<5x5xf32, #tpu.memory_space<smem>>
    %88 = vector.broadcast %87 : f32 to vector<1x128xf32>
    %89 = arith.addf %86, %88 : vector<1x128xf32>
    %cst_51 = arith.constant 0.000000e+00 : f32
    %90 = vector.broadcast %cst_51 : f32 to vector<1x128xf32>
    %91 = arith.maximumf %89, %90 : vector<1x128xf32>
    %92 = arith.addf %71, %91 : vector<1x128xf32>
    %c4 = arith.constant 4 : index
    %c0_52 = arith.constant 0 : index
    %93 = memref.load %arg2[%c4, %c0_52] : memref<5x4xf32, #tpu.memory_space<smem>>
    %94 = vector.broadcast %93 : f32 to vector<1x128xf32>
    %95 = arith.mulf %3, %94 : vector<1x128xf32>
    %c4_53 = arith.constant 4 : index
    %c1_54 = arith.constant 1 : index
    %96 = memref.load %arg2[%c4_53, %c1_54] : memref<5x4xf32, #tpu.memory_space<smem>>
    %97 = vector.broadcast %96 : f32 to vector<1x128xf32>
    %98 = arith.mulf %5, %97 : vector<1x128xf32>
    %99 = arith.addf %95, %98 : vector<1x128xf32>
    %c4_55 = arith.constant 4 : index
    %c2_56 = arith.constant 2 : index
    %100 = memref.load %arg2[%c4_55, %c2_56] : memref<5x4xf32, #tpu.memory_space<smem>>
    %101 = vector.broadcast %100 : f32 to vector<1x128xf32>
    %102 = arith.mulf %7, %101 : vector<1x128xf32>
    %103 = arith.addf %99, %102 : vector<1x128xf32>
    %c4_57 = arith.constant 4 : index
    %c3_58 = arith.constant 3 : index
    %104 = memref.load %arg2[%c4_57, %c3_58] : memref<5x4xf32, #tpu.memory_space<smem>>
    %105 = vector.broadcast %104 : f32 to vector<1x128xf32>
    %106 = arith.mulf %9, %105 : vector<1x128xf32>
    %107 = arith.addf %103, %106 : vector<1x128xf32>
    %c0_59 = arith.constant 0 : index
    %c4_60 = arith.constant 4 : index
    %108 = memref.load %arg3[%c0_59, %c4_60] : memref<5x5xf32, #tpu.memory_space<smem>>
    %109 = vector.broadcast %108 : f32 to vector<1x128xf32>
    %110 = arith.addf %107, %109 : vector<1x128xf32>
    %cst_61 = arith.constant 0.000000e+00 : f32
    %111 = vector.broadcast %cst_61 : f32 to vector<1x128xf32>
    %112 = arith.maximumf %110, %111 : vector<1x128xf32>
    %113 = arith.addf %92, %112 : vector<1x128xf32>
    %114 = arith.cmpf ogt, %113, %0 : vector<1x128xf32>
    %115 = arith.cmpf ogt, %113, %0 : vector<1x128xf32>
    %116 = arith.cmpf ogt, %113, %0 : vector<1x128xf32>
    %117 = arith.select %116, %113, %0 : vector<1x128xi1>, vector<1x128xf32>
    %118 = arith.select %115, %0, %117 : vector<1x128xi1>, vector<1x128xf32>
    %c0_i32_62 = arith.constant 0 : i32
    %119 = vector.broadcast %c0_i32_62 : i32 to vector<1x128xi32>
    %120 = arith.select %116, %119, %1 : vector<1x128xi1>, vector<1x128xi32>
    %121 = arith.select %115, %1, %120 : vector<1x128xi1>, vector<1x128xi32>
    %122 = arith.select %115, %113, %0 : vector<1x128xi1>, vector<1x128xf32>
    %123 = arith.select %114, %0, %122 : vector<1x128xi1>, vector<1x128xf32>
    %c0_i32_63 = arith.constant 0 : i32
    %124 = vector.broadcast %c0_i32_63 : i32 to vector<1x128xi32>
    %125 = arith.select %115, %124, %1 : vector<1x128xi1>, vector<1x128xi32>
    %126 = arith.select %114, %1, %125 : vector<1x128xi1>, vector<1x128xi32>
    %127 = arith.select %114, %113, %0 : vector<1x128xi1>, vector<1x128xf32>
    %c0_i32_64 = arith.constant 0 : i32
    %128 = vector.broadcast %c0_i32_64 : i32 to vector<1x128xi32>
    %129 = arith.select %114, %128, %1 : vector<1x128xi1>, vector<1x128xi32>
    %c4_65 = arith.constant 4 : index
    %c0_66 = arith.constant 0 : index
    %c0_67 = arith.constant 0 : index
    %130 = vector.load %arg1[%c4_65, %c0_66, %c0_67] : memref<20x1x128xf32, #tpu.memory_space<vmem>>, vector<1x1x128xf32>
    %131 = vector.shape_cast %130 : vector<1x1x128xf32> to vector<1x128xf32>
    %c5 = arith.constant 5 : index
    %c0_68 = arith.constant 0 : index
    %c0_69 = arith.constant 0 : index
    %132 = vector.load %arg1[%c5, %c0_68, %c0_69] : memref<20x1x128xf32, #tpu.memory_space<vmem>>, vector<1x1x128xf32>
    %133 = vector.shape_cast %132 : vector<1x1x128xf32> to vector<1x128xf32>
    %c6 = arith.constant 6 : index
    %c0_70 = arith.constant 0 : index
    %c0_71 = arith.constant 0 : index
    %134 = vector.load %arg1[%c6, %c0_70, %c0_71] : memref<20x1x128xf32, #tpu.memory_space<vmem>>, vector<1x1x128xf32>
    %135 = vector.shape_cast %134 : vector<1x1x128xf32> to vector<1x128xf32>
    %c7 = arith.constant 7 : index
    %c0_72 = arith.constant 0 : index
    %c0_73 = arith.constant 0 : index
    %136 = vector.load %arg1[%c7, %c0_72, %c0_73] : memref<20x1x128xf32, #tpu.memory_space<vmem>>, vector<1x1x128xf32>
    %137 = vector.shape_cast %136 : vector<1x1x128xf32> to vector<1x128xf32>
    %c0_74 = arith.constant 0 : index
    %c0_75 = arith.constant 0 : index
    %138 = memref.load %arg2[%c0_74, %c0_75] : memref<5x4xf32, #tpu.memory_space<smem>>
    %139 = vector.broadcast %138 : f32 to vector<1x128xf32>
    %140 = arith.mulf %131, %139 : vector<1x128xf32>
    %c0_76 = arith.constant 0 : index
    %c1_77 = arith.constant 1 : index
    %141 = memref.load %arg2[%c0_76, %c1_77] : memref<5x4xf32, #tpu.memory_space<smem>>
    %142 = vector.broadcast %141 : f32 to vector<1x128xf32>
    %143 = arith.mulf %133, %142 : vector<1x128xf32>
    %144 = arith.addf %140, %143 : vector<1x128xf32>
    %c0_78 = arith.constant 0 : index
    %c2_79 = arith.constant 2 : index
    %145 = memref.load %arg2[%c0_78, %c2_79] : memref<5x4xf32, #tpu.memory_space<smem>>
    %146 = vector.broadcast %145 : f32 to vector<1x128xf32>
    %147 = arith.mulf %135, %146 : vector<1x128xf32>
    %148 = arith.addf %144, %147 : vector<1x128xf32>
    %c0_80 = arith.constant 0 : index
    %c3_81 = arith.constant 3 : index
    %149 = memref.load %arg2[%c0_80, %c3_81] : memref<5x4xf32, #tpu.memory_space<smem>>
    %150 = vector.broadcast %149 : f32 to vector<1x128xf32>
    %151 = arith.mulf %137, %150 : vector<1x128xf32>
    %152 = arith.addf %148, %151 : vector<1x128xf32>
    %c1_82 = arith.constant 1 : index
    %c0_83 = arith.constant 0 : index
    %153 = memref.load %arg3[%c1_82, %c0_83] : memref<5x5xf32, #tpu.memory_space<smem>>
    %154 = vector.broadcast %153 : f32 to vector<1x128xf32>
    %155 = arith.addf %152, %154 : vector<1x128xf32>
    %cst_84 = arith.constant 0.000000e+00 : f32
    %156 = vector.broadcast %cst_84 : f32 to vector<1x128xf32>
    %157 = arith.maximumf %155, %156 : vector<1x128xf32>
    %c1_85 = arith.constant 1 : index
    %c0_86 = arith.constant 0 : index
    %158 = memref.load %arg2[%c1_85, %c0_86] : memref<5x4xf32, #tpu.memory_space<smem>>
    %159 = vector.broadcast %158 : f32 to vector<1x128xf32>
    %160 = arith.mulf %131, %159 : vector<1x128xf32>
    %c1_87 = arith.constant 1 : index
    %c1_88 = arith.constant 1 : index
    %161 = memref.load %arg2[%c1_87, %c1_88] : memref<5x4xf32, #tpu.memory_space<smem>>
    %162 = vector.broadcast %161 : f32 to vector<1x128xf32>
    %163 = arith.mulf %133, %162 : vector<1x128xf32>
    %164 = arith.addf %160, %163 : vector<1x128xf32>
    %c1_89 = arith.constant 1 : index
    %c2_90 = arith.constant 2 : index
    %165 = memref.load %arg2[%c1_89, %c2_90] : memref<5x4xf32, #tpu.memory_space<smem>>
    %166 = vector.broadcast %165 : f32 to vector<1x128xf32>
    %167 = arith.mulf %135, %166 : vector<1x128xf32>
    %168 = arith.addf %164, %167 : vector<1x128xf32>
    %c1_91 = arith.constant 1 : index
    %c3_92 = arith.constant 3 : index
    %169 = memref.load %arg2[%c1_91, %c3_92] : memref<5x4xf32, #tpu.memory_space<smem>>
    %170 = vector.broadcast %169 : f32 to vector<1x128xf32>
    %171 = arith.mulf %137, %170 : vector<1x128xf32>
    %172 = arith.addf %168, %171 : vector<1x128xf32>
    %c1_93 = arith.constant 1 : index
    %c1_94 = arith.constant 1 : index
    %173 = memref.load %arg3[%c1_93, %c1_94] : memref<5x5xf32, #tpu.memory_space<smem>>
    %174 = vector.broadcast %173 : f32 to vector<1x128xf32>
    %175 = arith.addf %172, %174 : vector<1x128xf32>
    %cst_95 = arith.constant 0.000000e+00 : f32
    %176 = vector.broadcast %cst_95 : f32 to vector<1x128xf32>
    %177 = arith.maximumf %175, %176 : vector<1x128xf32>
    %178 = arith.addf %157, %177 : vector<1x128xf32>
    %c2_96 = arith.constant 2 : index
    %c0_97 = arith.constant 0 : index
    %179 = memref.load %arg2[%c2_96, %c0_97] : memref<5x4xf32, #tpu.memory_space<smem>>
    %180 = vector.broadcast %179 : f32 to vector<1x128xf32>
    %181 = arith.mulf %131, %180 : vector<1x128xf32>
    %c2_98 = arith.constant 2 : index
    %c1_99 = arith.constant 1 : index
    %182 = memref.load %arg2[%c2_98, %c1_99] : memref<5x4xf32, #tpu.memory_space<smem>>
    %183 = vector.broadcast %182 : f32 to vector<1x128xf32>
    %184 = arith.mulf %133, %183 : vector<1x128xf32>
    %185 = arith.addf %181, %184 : vector<1x128xf32>
    %c2_100 = arith.constant 2 : index
    %c2_101 = arith.constant 2 : index
    %186 = memref.load %arg2[%c2_100, %c2_101] : memref<5x4xf32, #tpu.memory_space<smem>>
    %187 = vector.broadcast %186 : f32 to vector<1x128xf32>
    %188 = arith.mulf %135, %187 : vector<1x128xf32>
    %189 = arith.addf %185, %188 : vector<1x128xf32>
    %c2_102 = arith.constant 2 : index
    %c3_103 = arith.constant 3 : index
    %190 = memref.load %arg2[%c2_102, %c3_103] : memref<5x4xf32, #tpu.memory_space<smem>>
    %191 = vector.broadcast %190 : f32 to vector<1x128xf32>
    %192 = arith.mulf %137, %191 : vector<1x128xf32>
    %193 = arith.addf %189, %192 : vector<1x128xf32>
    %c1_104 = arith.constant 1 : index
    %c2_105 = arith.constant 2 : index
    %194 = memref.load %arg3[%c1_104, %c2_105] : memref<5x5xf32, #tpu.memory_space<smem>>
    %195 = vector.broadcast %194 : f32 to vector<1x128xf32>
    %196 = arith.addf %193, %195 : vector<1x128xf32>
    %cst_106 = arith.constant 0.000000e+00 : f32
    %197 = vector.broadcast %cst_106 : f32 to vector<1x128xf32>
    %198 = arith.maximumf %196, %197 : vector<1x128xf32>
    %199 = arith.addf %178, %198 : vector<1x128xf32>
    %c3_107 = arith.constant 3 : index
    %c0_108 = arith.constant 0 : index
    %200 = memref.load %arg2[%c3_107, %c0_108] : memref<5x4xf32, #tpu.memory_space<smem>>
    %201 = vector.broadcast %200 : f32 to vector<1x128xf32>
    %202 = arith.mulf %131, %201 : vector<1x128xf32>
    %c3_109 = arith.constant 3 : index
    %c1_110 = arith.constant 1 : index
    %203 = memref.load %arg2[%c3_109, %c1_110] : memref<5x4xf32, #tpu.memory_space<smem>>
    %204 = vector.broadcast %203 : f32 to vector<1x128xf32>
    %205 = arith.mulf %133, %204 : vector<1x128xf32>
    %206 = arith.addf %202, %205 : vector<1x128xf32>
    %c3_111 = arith.constant 3 : index
    %c2_112 = arith.constant 2 : index
    %207 = memref.load %arg2[%c3_111, %c2_112] : memref<5x4xf32, #tpu.memory_space<smem>>
    %208 = vector.broadcast %207 : f32 to vector<1x128xf32>
    %209 = arith.mulf %135, %208 : vector<1x128xf32>
    %210 = arith.addf %206, %209 : vector<1x128xf32>
    %c3_113 = arith.constant 3 : index
    %c3_114 = arith.constant 3 : index
    %211 = memref.load %arg2[%c3_113, %c3_114] : memref<5x4xf32, #tpu.memory_space<smem>>
    %212 = vector.broadcast %211 : f32 to vector<1x128xf32>
    %213 = arith.mulf %137, %212 : vector<1x128xf32>
    %214 = arith.addf %210, %213 : vector<1x128xf32>
    %c1_115 = arith.constant 1 : index
    %c3_116 = arith.constant 3 : index
    %215 = memref.load %arg3[%c1_115, %c3_116] : memref<5x5xf32, #tpu.memory_space<smem>>
    %216 = vector.broadcast %215 : f32 to vector<1x128xf32>
    %217 = arith.addf %214, %216 : vector<1x128xf32>
    %cst_117 = arith.constant 0.000000e+00 : f32
    %218 = vector.broadcast %cst_117 : f32 to vector<1x128xf32>
    %219 = arith.maximumf %217, %218 : vector<1x128xf32>
    %220 = arith.addf %199, %219 : vector<1x128xf32>
    %c4_118 = arith.constant 4 : index
    %c0_119 = arith.constant 0 : index
    %221 = memref.load %arg2[%c4_118, %c0_119] : memref<5x4xf32, #tpu.memory_space<smem>>
    %222 = vector.broadcast %221 : f32 to vector<1x128xf32>
    %223 = arith.mulf %131, %222 : vector<1x128xf32>
    %c4_120 = arith.constant 4 : index
    %c1_121 = arith.constant 1 : index
    %224 = memref.load %arg2[%c4_120, %c1_121] : memref<5x4xf32, #tpu.memory_space<smem>>
    %225 = vector.broadcast %224 : f32 to vector<1x128xf32>
    %226 = arith.mulf %133, %225 : vector<1x128xf32>
    %227 = arith.addf %223, %226 : vector<1x128xf32>
    %c4_122 = arith.constant 4 : index
    %c2_123 = arith.constant 2 : index
    %228 = memref.load %arg2[%c4_122, %c2_123] : memref<5x4xf32, #tpu.memory_space<smem>>
    %229 = vector.broadcast %228 : f32 to vector<1x128xf32>
    %230 = arith.mulf %135, %229 : vector<1x128xf32>
    %231 = arith.addf %227, %230 : vector<1x128xf32>
    %c4_124 = arith.constant 4 : index
    %c3_125 = arith.constant 3 : index
    %232 = memref.load %arg2[%c4_124, %c3_125] : memref<5x4xf32, #tpu.memory_space<smem>>
    %233 = vector.broadcast %232 : f32 to vector<1x128xf32>
    %234 = arith.mulf %137, %233 : vector<1x128xf32>
    %235 = arith.addf %231, %234 : vector<1x128xf32>
    %c1_126 = arith.constant 1 : index
    %c4_127 = arith.constant 4 : index
    %236 = memref.load %arg3[%c1_126, %c4_127] : memref<5x5xf32, #tpu.memory_space<smem>>
    %237 = vector.broadcast %236 : f32 to vector<1x128xf32>
    %238 = arith.addf %235, %237 : vector<1x128xf32>
    %cst_128 = arith.constant 0.000000e+00 : f32
    %239 = vector.broadcast %cst_128 : f32 to vector<1x128xf32>
    %240 = arith.maximumf %238, %239 : vector<1x128xf32>
    %241 = arith.addf %220, %240 : vector<1x128xf32>
    %242 = arith.cmpf ogt, %241, %127 : vector<1x128xf32>
    %243 = arith.cmpf ogt, %241, %123 : vector<1x128xf32>
    %244 = arith.cmpf ogt, %241, %118 : vector<1x128xf32>
    %245 = arith.select %244, %241, %118 : vector<1x128xi1>, vector<1x128xf32>
    %246 = arith.select %243, %123, %245 : vector<1x128xi1>, vector<1x128xf32>
    %c1_i32 = arith.constant 1 : i32
    %247 = vector.broadcast %c1_i32 : i32 to vector<1x128xi32>
    %248 = arith.select %244, %247, %121 : vector<1x128xi1>, vector<1x128xi32>
    %249 = arith.select %243, %126, %248 : vector<1x128xi1>, vector<1x128xi32>
    %250 = arith.select %243, %241, %123 : vector<1x128xi1>, vector<1x128xf32>
    %251 = arith.select %242, %127, %250 : vector<1x128xi1>, vector<1x128xf32>
    %c1_i32_129 = arith.constant 1 : i32
    %252 = vector.broadcast %c1_i32_129 : i32 to vector<1x128xi32>
    %253 = arith.select %243, %252, %126 : vector<1x128xi1>, vector<1x128xi32>
    %254 = arith.select %242, %129, %253 : vector<1x128xi1>, vector<1x128xi32>
    %255 = arith.select %242, %241, %127 : vector<1x128xi1>, vector<1x128xf32>
    %c1_i32_130 = arith.constant 1 : i32
    %256 = vector.broadcast %c1_i32_130 : i32 to vector<1x128xi32>
    %257 = arith.select %242, %256, %129 : vector<1x128xi1>, vector<1x128xi32>
    %c8 = arith.constant 8 : index
    %c0_131 = arith.constant 0 : index
    %c0_132 = arith.constant 0 : index
    %258 = vector.load %arg1[%c8, %c0_131, %c0_132] : memref<20x1x128xf32, #tpu.memory_space<vmem>>, vector<1x1x128xf32>
    %259 = vector.shape_cast %258 : vector<1x1x128xf32> to vector<1x128xf32>
    %c9 = arith.constant 9 : index
    %c0_133 = arith.constant 0 : index
    %c0_134 = arith.constant 0 : index
    %260 = vector.load %arg1[%c9, %c0_133, %c0_134] : memref<20x1x128xf32, #tpu.memory_space<vmem>>, vector<1x1x128xf32>
    %261 = vector.shape_cast %260 : vector<1x1x128xf32> to vector<1x128xf32>
    %c10 = arith.constant 10 : index
    %c0_135 = arith.constant 0 : index
    %c0_136 = arith.constant 0 : index
    %262 = vector.load %arg1[%c10, %c0_135, %c0_136] : memref<20x1x128xf32, #tpu.memory_space<vmem>>, vector<1x1x128xf32>
    %263 = vector.shape_cast %262 : vector<1x1x128xf32> to vector<1x128xf32>
    %c11 = arith.constant 11 : index
    %c0_137 = arith.constant 0 : index
    %c0_138 = arith.constant 0 : index
    %264 = vector.load %arg1[%c11, %c0_137, %c0_138] : memref<20x1x128xf32, #tpu.memory_space<vmem>>, vector<1x1x128xf32>
    %265 = vector.shape_cast %264 : vector<1x1x128xf32> to vector<1x128xf32>
    %c0_139 = arith.constant 0 : index
    %c0_140 = arith.constant 0 : index
    %266 = memref.load %arg2[%c0_139, %c0_140] : memref<5x4xf32, #tpu.memory_space<smem>>
    %267 = vector.broadcast %266 : f32 to vector<1x128xf32>
    %268 = arith.mulf %259, %267 : vector<1x128xf32>
    %c0_141 = arith.constant 0 : index
    %c1_142 = arith.constant 1 : index
    %269 = memref.load %arg2[%c0_141, %c1_142] : memref<5x4xf32, #tpu.memory_space<smem>>
    %270 = vector.broadcast %269 : f32 to vector<1x128xf32>
    %271 = arith.mulf %261, %270 : vector<1x128xf32>
    %272 = arith.addf %268, %271 : vector<1x128xf32>
    %c0_143 = arith.constant 0 : index
    %c2_144 = arith.constant 2 : index
    %273 = memref.load %arg2[%c0_143, %c2_144] : memref<5x4xf32, #tpu.memory_space<smem>>
    %274 = vector.broadcast %273 : f32 to vector<1x128xf32>
    %275 = arith.mulf %263, %274 : vector<1x128xf32>
    %276 = arith.addf %272, %275 : vector<1x128xf32>
    %c0_145 = arith.constant 0 : index
    %c3_146 = arith.constant 3 : index
    %277 = memref.load %arg2[%c0_145, %c3_146] : memref<5x4xf32, #tpu.memory_space<smem>>
    %278 = vector.broadcast %277 : f32 to vector<1x128xf32>
    %279 = arith.mulf %265, %278 : vector<1x128xf32>
    %280 = arith.addf %276, %279 : vector<1x128xf32>
    %c2_147 = arith.constant 2 : index
    %c0_148 = arith.constant 0 : index
    %281 = memref.load %arg3[%c2_147, %c0_148] : memref<5x5xf32, #tpu.memory_space<smem>>
    %282 = vector.broadcast %281 : f32 to vector<1x128xf32>
    %283 = arith.addf %280, %282 : vector<1x128xf32>
    %cst_149 = arith.constant 0.000000e+00 : f32
    %284 = vector.broadcast %cst_149 : f32 to vector<1x128xf32>
    %285 = arith.maximumf %283, %284 : vector<1x128xf32>
    %c1_150 = arith.constant 1 : index
    %c0_151 = arith.constant 0 : index
    %286 = memref.load %arg2[%c1_150, %c0_151] : memref<5x4xf32, #tpu.memory_space<smem>>
    %287 = vector.broadcast %286 : f32 to vector<1x128xf32>
    %288 = arith.mulf %259, %287 : vector<1x128xf32>
    %c1_152 = arith.constant 1 : index
    %c1_153 = arith.constant 1 : index
    %289 = memref.load %arg2[%c1_152, %c1_153] : memref<5x4xf32, #tpu.memory_space<smem>>
    %290 = vector.broadcast %289 : f32 to vector<1x128xf32>
    %291 = arith.mulf %261, %290 : vector<1x128xf32>
    %292 = arith.addf %288, %291 : vector<1x128xf32>
    %c1_154 = arith.constant 1 : index
    %c2_155 = arith.constant 2 : index
    %293 = memref.load %arg2[%c1_154, %c2_155] : memref<5x4xf32, #tpu.memory_space<smem>>
    %294 = vector.broadcast %293 : f32 to vector<1x128xf32>
    %295 = arith.mulf %263, %294 : vector<1x128xf32>
    %296 = arith.addf %292, %295 : vector<1x128xf32>
    %c1_156 = arith.constant 1 : index
    %c3_157 = arith.constant 3 : index
    %297 = memref.load %arg2[%c1_156, %c3_157] : memref<5x4xf32, #tpu.memory_space<smem>>
    %298 = vector.broadcast %297 : f32 to vector<1x128xf32>
    %299 = arith.mulf %265, %298 : vector<1x128xf32>
    %300 = arith.addf %296, %299 : vector<1x128xf32>
    %c2_158 = arith.constant 2 : index
    %c1_159 = arith.constant 1 : index
    %301 = memref.load %arg3[%c2_158, %c1_159] : memref<5x5xf32, #tpu.memory_space<smem>>
    %302 = vector.broadcast %301 : f32 to vector<1x128xf32>
    %303 = arith.addf %300, %302 : vector<1x128xf32>
    %cst_160 = arith.constant 0.000000e+00 : f32
    %304 = vector.broadcast %cst_160 : f32 to vector<1x128xf32>
    %305 = arith.maximumf %303, %304 : vector<1x128xf32>
    %306 = arith.addf %285, %305 : vector<1x128xf32>
    %c2_161 = arith.constant 2 : index
    %c0_162 = arith.constant 0 : index
    %307 = memref.load %arg2[%c2_161, %c0_162] : memref<5x4xf32, #tpu.memory_space<smem>>
    %308 = vector.broadcast %307 : f32 to vector<1x128xf32>
    %309 = arith.mulf %259, %308 : vector<1x128xf32>
    %c2_163 = arith.constant 2 : index
    %c1_164 = arith.constant 1 : index
    %310 = memref.load %arg2[%c2_163, %c1_164] : memref<5x4xf32, #tpu.memory_space<smem>>
    %311 = vector.broadcast %310 : f32 to vector<1x128xf32>
    %312 = arith.mulf %261, %311 : vector<1x128xf32>
    %313 = arith.addf %309, %312 : vector<1x128xf32>
    %c2_165 = arith.constant 2 : index
    %c2_166 = arith.constant 2 : index
    %314 = memref.load %arg2[%c2_165, %c2_166] : memref<5x4xf32, #tpu.memory_space<smem>>
    %315 = vector.broadcast %314 : f32 to vector<1x128xf32>
    %316 = arith.mulf %263, %315 : vector<1x128xf32>
    %317 = arith.addf %313, %316 : vector<1x128xf32>
    %c2_167 = arith.constant 2 : index
    %c3_168 = arith.constant 3 : index
    %318 = memref.load %arg2[%c2_167, %c3_168] : memref<5x4xf32, #tpu.memory_space<smem>>
    %319 = vector.broadcast %318 : f32 to vector<1x128xf32>
    %320 = arith.mulf %265, %319 : vector<1x128xf32>
    %321 = arith.addf %317, %320 : vector<1x128xf32>
    %c2_169 = arith.constant 2 : index
    %c2_170 = arith.constant 2 : index
    %322 = memref.load %arg3[%c2_169, %c2_170] : memref<5x5xf32, #tpu.memory_space<smem>>
    %323 = vector.broadcast %322 : f32 to vector<1x128xf32>
    %324 = arith.addf %321, %323 : vector<1x128xf32>
    %cst_171 = arith.constant 0.000000e+00 : f32
    %325 = vector.broadcast %cst_171 : f32 to vector<1x128xf32>
    %326 = arith.maximumf %324, %325 : vector<1x128xf32>
    %327 = arith.addf %306, %326 : vector<1x128xf32>
    %c3_172 = arith.constant 3 : index
    %c0_173 = arith.constant 0 : index
    %328 = memref.load %arg2[%c3_172, %c0_173] : memref<5x4xf32, #tpu.memory_space<smem>>
    %329 = vector.broadcast %328 : f32 to vector<1x128xf32>
    %330 = arith.mulf %259, %329 : vector<1x128xf32>
    %c3_174 = arith.constant 3 : index
    %c1_175 = arith.constant 1 : index
    %331 = memref.load %arg2[%c3_174, %c1_175] : memref<5x4xf32, #tpu.memory_space<smem>>
    %332 = vector.broadcast %331 : f32 to vector<1x128xf32>
    %333 = arith.mulf %261, %332 : vector<1x128xf32>
    %334 = arith.addf %330, %333 : vector<1x128xf32>
    %c3_176 = arith.constant 3 : index
    %c2_177 = arith.constant 2 : index
    %335 = memref.load %arg2[%c3_176, %c2_177] : memref<5x4xf32, #tpu.memory_space<smem>>
    %336 = vector.broadcast %335 : f32 to vector<1x128xf32>
    %337 = arith.mulf %263, %336 : vector<1x128xf32>
    %338 = arith.addf %334, %337 : vector<1x128xf32>
    %c3_178 = arith.constant 3 : index
    %c3_179 = arith.constant 3 : index
    %339 = memref.load %arg2[%c3_178, %c3_179] : memref<5x4xf32, #tpu.memory_space<smem>>
    %340 = vector.broadcast %339 : f32 to vector<1x128xf32>
    %341 = arith.mulf %265, %340 : vector<1x128xf32>
    %342 = arith.addf %338, %341 : vector<1x128xf32>
    %c2_180 = arith.constant 2 : index
    %c3_181 = arith.constant 3 : index
    %343 = memref.load %arg3[%c2_180, %c3_181] : memref<5x5xf32, #tpu.memory_space<smem>>
    %344 = vector.broadcast %343 : f32 to vector<1x128xf32>
    %345 = arith.addf %342, %344 : vector<1x128xf32>
    %cst_182 = arith.constant 0.000000e+00 : f32
    %346 = vector.broadcast %cst_182 : f32 to vector<1x128xf32>
    %347 = arith.maximumf %345, %346 : vector<1x128xf32>
    %348 = arith.addf %327, %347 : vector<1x128xf32>
    %c4_183 = arith.constant 4 : index
    %c0_184 = arith.constant 0 : index
    %349 = memref.load %arg2[%c4_183, %c0_184] : memref<5x4xf32, #tpu.memory_space<smem>>
    %350 = vector.broadcast %349 : f32 to vector<1x128xf32>
    %351 = arith.mulf %259, %350 : vector<1x128xf32>
    %c4_185 = arith.constant 4 : index
    %c1_186 = arith.constant 1 : index
    %352 = memref.load %arg2[%c4_185, %c1_186] : memref<5x4xf32, #tpu.memory_space<smem>>
    %353 = vector.broadcast %352 : f32 to vector<1x128xf32>
    %354 = arith.mulf %261, %353 : vector<1x128xf32>
    %355 = arith.addf %351, %354 : vector<1x128xf32>
    %c4_187 = arith.constant 4 : index
    %c2_188 = arith.constant 2 : index
    %356 = memref.load %arg2[%c4_187, %c2_188] : memref<5x4xf32, #tpu.memory_space<smem>>
    %357 = vector.broadcast %356 : f32 to vector<1x128xf32>
    %358 = arith.mulf %263, %357 : vector<1x128xf32>
    %359 = arith.addf %355, %358 : vector<1x128xf32>
    %c4_189 = arith.constant 4 : index
    %c3_190 = arith.constant 3 : index
    %360 = memref.load %arg2[%c4_189, %c3_190] : memref<5x4xf32, #tpu.memory_space<smem>>
    %361 = vector.broadcast %360 : f32 to vector<1x128xf32>
    %362 = arith.mulf %265, %361 : vector<1x128xf32>
    %363 = arith.addf %359, %362 : vector<1x128xf32>
    %c2_191 = arith.constant 2 : index
    %c4_192 = arith.constant 4 : index
    %364 = memref.load %arg3[%c2_191, %c4_192] : memref<5x5xf32, #tpu.memory_space<smem>>
    %365 = vector.broadcast %364 : f32 to vector<1x128xf32>
    %366 = arith.addf %363, %365 : vector<1x128xf32>
    %cst_193 = arith.constant 0.000000e+00 : f32
    %367 = vector.broadcast %cst_193 : f32 to vector<1x128xf32>
    %368 = arith.maximumf %366, %367 : vector<1x128xf32>
    %369 = arith.addf %348, %368 : vector<1x128xf32>
    %370 = arith.cmpf ogt, %369, %255 : vector<1x128xf32>
    %371 = arith.cmpf ogt, %369, %251 : vector<1x128xf32>
    %372 = arith.cmpf ogt, %369, %246 : vector<1x128xf32>
    %373 = arith.select %372, %369, %246 : vector<1x128xi1>, vector<1x128xf32>
    %374 = arith.select %371, %251, %373 : vector<1x128xi1>, vector<1x128xf32>
    %c2_i32 = arith.constant 2 : i32
    %375 = vector.broadcast %c2_i32 : i32 to vector<1x128xi32>
    %376 = arith.select %372, %375, %249 : vector<1x128xi1>, vector<1x128xi32>
    %377 = arith.select %371, %254, %376 : vector<1x128xi1>, vector<1x128xi32>
    %378 = arith.select %371, %369, %251 : vector<1x128xi1>, vector<1x128xf32>
    %379 = arith.select %370, %255, %378 : vector<1x128xi1>, vector<1x128xf32>
    %c2_i32_194 = arith.constant 2 : i32
    %380 = vector.broadcast %c2_i32_194 : i32 to vector<1x128xi32>
    %381 = arith.select %371, %380, %254 : vector<1x128xi1>, vector<1x128xi32>
    %382 = arith.select %370, %257, %381 : vector<1x128xi1>, vector<1x128xi32>
    %383 = arith.select %370, %369, %255 : vector<1x128xi1>, vector<1x128xf32>
    %c2_i32_195 = arith.constant 2 : i32
    %384 = vector.broadcast %c2_i32_195 : i32 to vector<1x128xi32>
    %385 = arith.select %370, %384, %257 : vector<1x128xi1>, vector<1x128xi32>
    %c12 = arith.constant 12 : index
    %c0_196 = arith.constant 0 : index
    %c0_197 = arith.constant 0 : index
    %386 = vector.load %arg1[%c12, %c0_196, %c0_197] : memref<20x1x128xf32, #tpu.memory_space<vmem>>, vector<1x1x128xf32>
    %387 = vector.shape_cast %386 : vector<1x1x128xf32> to vector<1x128xf32>
    %c13 = arith.constant 13 : index
    %c0_198 = arith.constant 0 : index
    %c0_199 = arith.constant 0 : index
    %388 = vector.load %arg1[%c13, %c0_198, %c0_199] : memref<20x1x128xf32, #tpu.memory_space<vmem>>, vector<1x1x128xf32>
    %389 = vector.shape_cast %388 : vector<1x1x128xf32> to vector<1x128xf32>
    %c14 = arith.constant 14 : index
    %c0_200 = arith.constant 0 : index
    %c0_201 = arith.constant 0 : index
    %390 = vector.load %arg1[%c14, %c0_200, %c0_201] : memref<20x1x128xf32, #tpu.memory_space<vmem>>, vector<1x1x128xf32>
    %391 = vector.shape_cast %390 : vector<1x1x128xf32> to vector<1x128xf32>
    %c15 = arith.constant 15 : index
    %c0_202 = arith.constant 0 : index
    %c0_203 = arith.constant 0 : index
    %392 = vector.load %arg1[%c15, %c0_202, %c0_203] : memref<20x1x128xf32, #tpu.memory_space<vmem>>, vector<1x1x128xf32>
    %393 = vector.shape_cast %392 : vector<1x1x128xf32> to vector<1x128xf32>
    %c0_204 = arith.constant 0 : index
    %c0_205 = arith.constant 0 : index
    %394 = memref.load %arg2[%c0_204, %c0_205] : memref<5x4xf32, #tpu.memory_space<smem>>
    %395 = vector.broadcast %394 : f32 to vector<1x128xf32>
    %396 = arith.mulf %387, %395 : vector<1x128xf32>
    %c0_206 = arith.constant 0 : index
    %c1_207 = arith.constant 1 : index
    %397 = memref.load %arg2[%c0_206, %c1_207] : memref<5x4xf32, #tpu.memory_space<smem>>
    %398 = vector.broadcast %397 : f32 to vector<1x128xf32>
    %399 = arith.mulf %389, %398 : vector<1x128xf32>
    %400 = arith.addf %396, %399 : vector<1x128xf32>
    %c0_208 = arith.constant 0 : index
    %c2_209 = arith.constant 2 : index
    %401 = memref.load %arg2[%c0_208, %c2_209] : memref<5x4xf32, #tpu.memory_space<smem>>
    %402 = vector.broadcast %401 : f32 to vector<1x128xf32>
    %403 = arith.mulf %391, %402 : vector<1x128xf32>
    %404 = arith.addf %400, %403 : vector<1x128xf32>
    %c0_210 = arith.constant 0 : index
    %c3_211 = arith.constant 3 : index
    %405 = memref.load %arg2[%c0_210, %c3_211] : memref<5x4xf32, #tpu.memory_space<smem>>
    %406 = vector.broadcast %405 : f32 to vector<1x128xf32>
    %407 = arith.mulf %393, %406 : vector<1x128xf32>
    %408 = arith.addf %404, %407 : vector<1x128xf32>
    %c3_212 = arith.constant 3 : index
    %c0_213 = arith.constant 0 : index
    %409 = memref.load %arg3[%c3_212, %c0_213] : memref<5x5xf32, #tpu.memory_space<smem>>
    %410 = vector.broadcast %409 : f32 to vector<1x128xf32>
    %411 = arith.addf %408, %410 : vector<1x128xf32>
    %cst_214 = arith.constant 0.000000e+00 : f32
    %412 = vector.broadcast %cst_214 : f32 to vector<1x128xf32>
    %413 = arith.maximumf %411, %412 : vector<1x128xf32>
    %c1_215 = arith.constant 1 : index
    %c0_216 = arith.constant 0 : index
    %414 = memref.load %arg2[%c1_215, %c0_216] : memref<5x4xf32, #tpu.memory_space<smem>>
    %415 = vector.broadcast %414 : f32 to vector<1x128xf32>
    %416 = arith.mulf %387, %415 : vector<1x128xf32>
    %c1_217 = arith.constant 1 : index
    %c1_218 = arith.constant 1 : index
    %417 = memref.load %arg2[%c1_217, %c1_218] : memref<5x4xf32, #tpu.memory_space<smem>>
    %418 = vector.broadcast %417 : f32 to vector<1x128xf32>
    %419 = arith.mulf %389, %418 : vector<1x128xf32>
    %420 = arith.addf %416, %419 : vector<1x128xf32>
    %c1_219 = arith.constant 1 : index
    %c2_220 = arith.constant 2 : index
    %421 = memref.load %arg2[%c1_219, %c2_220] : memref<5x4xf32, #tpu.memory_space<smem>>
    %422 = vector.broadcast %421 : f32 to vector<1x128xf32>
    %423 = arith.mulf %391, %422 : vector<1x128xf32>
    %424 = arith.addf %420, %423 : vector<1x128xf32>
    %c1_221 = arith.constant 1 : index
    %c3_222 = arith.constant 3 : index
    %425 = memref.load %arg2[%c1_221, %c3_222] : memref<5x4xf32, #tpu.memory_space<smem>>
    %426 = vector.broadcast %425 : f32 to vector<1x128xf32>
    %427 = arith.mulf %393, %426 : vector<1x128xf32>
    %428 = arith.addf %424, %427 : vector<1x128xf32>
    %c3_223 = arith.constant 3 : index
    %c1_224 = arith.constant 1 : index
    %429 = memref.load %arg3[%c3_223, %c1_224] : memref<5x5xf32, #tpu.memory_space<smem>>
    %430 = vector.broadcast %429 : f32 to vector<1x128xf32>
    %431 = arith.addf %428, %430 : vector<1x128xf32>
    %cst_225 = arith.constant 0.000000e+00 : f32
    %432 = vector.broadcast %cst_225 : f32 to vector<1x128xf32>
    %433 = arith.maximumf %431, %432 : vector<1x128xf32>
    %434 = arith.addf %413, %433 : vector<1x128xf32>
    %c2_226 = arith.constant 2 : index
    %c0_227 = arith.constant 0 : index
    %435 = memref.load %arg2[%c2_226, %c0_227] : memref<5x4xf32, #tpu.memory_space<smem>>
    %436 = vector.broadcast %435 : f32 to vector<1x128xf32>
    %437 = arith.mulf %387, %436 : vector<1x128xf32>
    %c2_228 = arith.constant 2 : index
    %c1_229 = arith.constant 1 : index
    %438 = memref.load %arg2[%c2_228, %c1_229] : memref<5x4xf32, #tpu.memory_space<smem>>
    %439 = vector.broadcast %438 : f32 to vector<1x128xf32>
    %440 = arith.mulf %389, %439 : vector<1x128xf32>
    %441 = arith.addf %437, %440 : vector<1x128xf32>
    %c2_230 = arith.constant 2 : index
    %c2_231 = arith.constant 2 : index
    %442 = memref.load %arg2[%c2_230, %c2_231] : memref<5x4xf32, #tpu.memory_space<smem>>
    %443 = vector.broadcast %442 : f32 to vector<1x128xf32>
    %444 = arith.mulf %391, %443 : vector<1x128xf32>
    %445 = arith.addf %441, %444 : vector<1x128xf32>
    %c2_232 = arith.constant 2 : index
    %c3_233 = arith.constant 3 : index
    %446 = memref.load %arg2[%c2_232, %c3_233] : memref<5x4xf32, #tpu.memory_space<smem>>
    %447 = vector.broadcast %446 : f32 to vector<1x128xf32>
    %448 = arith.mulf %393, %447 : vector<1x128xf32>
    %449 = arith.addf %445, %448 : vector<1x128xf32>
    %c3_234 = arith.constant 3 : index
    %c2_235 = arith.constant 2 : index
    %450 = memref.load %arg3[%c3_234, %c2_235] : memref<5x5xf32, #tpu.memory_space<smem>>
    %451 = vector.broadcast %450 : f32 to vector<1x128xf32>
    %452 = arith.addf %449, %451 : vector<1x128xf32>
    %cst_236 = arith.constant 0.000000e+00 : f32
    %453 = vector.broadcast %cst_236 : f32 to vector<1x128xf32>
    %454 = arith.maximumf %452, %453 : vector<1x128xf32>
    %455 = arith.addf %434, %454 : vector<1x128xf32>
    %c3_237 = arith.constant 3 : index
    %c0_238 = arith.constant 0 : index
    %456 = memref.load %arg2[%c3_237, %c0_238] : memref<5x4xf32, #tpu.memory_space<smem>>
    %457 = vector.broadcast %456 : f32 to vector<1x128xf32>
    %458 = arith.mulf %387, %457 : vector<1x128xf32>
    %c3_239 = arith.constant 3 : index
    %c1_240 = arith.constant 1 : index
    %459 = memref.load %arg2[%c3_239, %c1_240] : memref<5x4xf32, #tpu.memory_space<smem>>
    %460 = vector.broadcast %459 : f32 to vector<1x128xf32>
    %461 = arith.mulf %389, %460 : vector<1x128xf32>
    %462 = arith.addf %458, %461 : vector<1x128xf32>
    %c3_241 = arith.constant 3 : index
    %c2_242 = arith.constant 2 : index
    %463 = memref.load %arg2[%c3_241, %c2_242] : memref<5x4xf32, #tpu.memory_space<smem>>
    %464 = vector.broadcast %463 : f32 to vector<1x128xf32>
    %465 = arith.mulf %391, %464 : vector<1x128xf32>
    %466 = arith.addf %462, %465 : vector<1x128xf32>
    %c3_243 = arith.constant 3 : index
    %c3_244 = arith.constant 3 : index
    %467 = memref.load %arg2[%c3_243, %c3_244] : memref<5x4xf32, #tpu.memory_space<smem>>
    %468 = vector.broadcast %467 : f32 to vector<1x128xf32>
    %469 = arith.mulf %393, %468 : vector<1x128xf32>
    %470 = arith.addf %466, %469 : vector<1x128xf32>
    %c3_245 = arith.constant 3 : index
    %c3_246 = arith.constant 3 : index
    %471 = memref.load %arg3[%c3_245, %c3_246] : memref<5x5xf32, #tpu.memory_space<smem>>
    %472 = vector.broadcast %471 : f32 to vector<1x128xf32>
    %473 = arith.addf %470, %472 : vector<1x128xf32>
    %cst_247 = arith.constant 0.000000e+00 : f32
    %474 = vector.broadcast %cst_247 : f32 to vector<1x128xf32>
    %475 = arith.maximumf %473, %474 : vector<1x128xf32>
    %476 = arith.addf %455, %475 : vector<1x128xf32>
    %c4_248 = arith.constant 4 : index
    %c0_249 = arith.constant 0 : index
    %477 = memref.load %arg2[%c4_248, %c0_249] : memref<5x4xf32, #tpu.memory_space<smem>>
    %478 = vector.broadcast %477 : f32 to vector<1x128xf32>
    %479 = arith.mulf %387, %478 : vector<1x128xf32>
    %c4_250 = arith.constant 4 : index
    %c1_251 = arith.constant 1 : index
    %480 = memref.load %arg2[%c4_250, %c1_251] : memref<5x4xf32, #tpu.memory_space<smem>>
    %481 = vector.broadcast %480 : f32 to vector<1x128xf32>
    %482 = arith.mulf %389, %481 : vector<1x128xf32>
    %483 = arith.addf %479, %482 : vector<1x128xf32>
    %c4_252 = arith.constant 4 : index
    %c2_253 = arith.constant 2 : index
    %484 = memref.load %arg2[%c4_252, %c2_253] : memref<5x4xf32, #tpu.memory_space<smem>>
    %485 = vector.broadcast %484 : f32 to vector<1x128xf32>
    %486 = arith.mulf %391, %485 : vector<1x128xf32>
    %487 = arith.addf %483, %486 : vector<1x128xf32>
    %c4_254 = arith.constant 4 : index
    %c3_255 = arith.constant 3 : index
    %488 = memref.load %arg2[%c4_254, %c3_255] : memref<5x4xf32, #tpu.memory_space<smem>>
    %489 = vector.broadcast %488 : f32 to vector<1x128xf32>
    %490 = arith.mulf %393, %489 : vector<1x128xf32>
    %491 = arith.addf %487, %490 : vector<1x128xf32>
    %c3_256 = arith.constant 3 : index
    %c4_257 = arith.constant 4 : index
    %492 = memref.load %arg3[%c3_256, %c4_257] : memref<5x5xf32, #tpu.memory_space<smem>>
    %493 = vector.broadcast %492 : f32 to vector<1x128xf32>
    %494 = arith.addf %491, %493 : vector<1x128xf32>
    %cst_258 = arith.constant 0.000000e+00 : f32
    %495 = vector.broadcast %cst_258 : f32 to vector<1x128xf32>
    %496 = arith.maximumf %494, %495 : vector<1x128xf32>
    %497 = arith.addf %476, %496 : vector<1x128xf32>
    %498 = arith.cmpf ogt, %497, %383 : vector<1x128xf32>
    %499 = arith.cmpf ogt, %497, %379 : vector<1x128xf32>
    %500 = arith.cmpf ogt, %497, %374 : vector<1x128xf32>
    %501 = arith.select %500, %497, %374 : vector<1x128xi1>, vector<1x128xf32>
    %502 = arith.select %499, %379, %501 : vector<1x128xi1>, vector<1x128xf32>
    %c3_i32 = arith.constant 3 : i32
    %503 = vector.broadcast %c3_i32 : i32 to vector<1x128xi32>
    %504 = arith.select %500, %503, %377 : vector<1x128xi1>, vector<1x128xi32>
    %505 = arith.select %499, %382, %504 : vector<1x128xi1>, vector<1x128xi32>
    %506 = arith.select %499, %497, %379 : vector<1x128xi1>, vector<1x128xf32>
    %507 = arith.select %498, %383, %506 : vector<1x128xi1>, vector<1x128xf32>
    %c3_i32_259 = arith.constant 3 : i32
    %508 = vector.broadcast %c3_i32_259 : i32 to vector<1x128xi32>
    %509 = arith.select %499, %508, %382 : vector<1x128xi1>, vector<1x128xi32>
    %510 = arith.select %498, %385, %509 : vector<1x128xi1>, vector<1x128xi32>
    %511 = arith.select %498, %497, %383 : vector<1x128xi1>, vector<1x128xf32>
    %c3_i32_260 = arith.constant 3 : i32
    %512 = vector.broadcast %c3_i32_260 : i32 to vector<1x128xi32>
    %513 = arith.select %498, %512, %385 : vector<1x128xi1>, vector<1x128xi32>
    %c16 = arith.constant 16 : index
    %c0_261 = arith.constant 0 : index
    %c0_262 = arith.constant 0 : index
    %514 = vector.load %arg1[%c16, %c0_261, %c0_262] : memref<20x1x128xf32, #tpu.memory_space<vmem>>, vector<1x1x128xf32>
    %515 = vector.shape_cast %514 : vector<1x1x128xf32> to vector<1x128xf32>
    %c17 = arith.constant 17 : index
    %c0_263 = arith.constant 0 : index
    %c0_264 = arith.constant 0 : index
    %516 = vector.load %arg1[%c17, %c0_263, %c0_264] : memref<20x1x128xf32, #tpu.memory_space<vmem>>, vector<1x1x128xf32>
    %517 = vector.shape_cast %516 : vector<1x1x128xf32> to vector<1x128xf32>
    %c18 = arith.constant 18 : index
    %c0_265 = arith.constant 0 : index
    %c0_266 = arith.constant 0 : index
    %518 = vector.load %arg1[%c18, %c0_265, %c0_266] : memref<20x1x128xf32, #tpu.memory_space<vmem>>, vector<1x1x128xf32>
    %519 = vector.shape_cast %518 : vector<1x1x128xf32> to vector<1x128xf32>
    %c19 = arith.constant 19 : index
    %c0_267 = arith.constant 0 : index
    %c0_268 = arith.constant 0 : index
    %520 = vector.load %arg1[%c19, %c0_267, %c0_268] : memref<20x1x128xf32, #tpu.memory_space<vmem>>, vector<1x1x128xf32>
    %521 = vector.shape_cast %520 : vector<1x1x128xf32> to vector<1x128xf32>
    %c0_269 = arith.constant 0 : index
    %c0_270 = arith.constant 0 : index
    %522 = memref.load %arg2[%c0_269, %c0_270] : memref<5x4xf32, #tpu.memory_space<smem>>
    %523 = vector.broadcast %522 : f32 to vector<1x128xf32>
    %524 = arith.mulf %515, %523 : vector<1x128xf32>
    %c0_271 = arith.constant 0 : index
    %c1_272 = arith.constant 1 : index
    %525 = memref.load %arg2[%c0_271, %c1_272] : memref<5x4xf32, #tpu.memory_space<smem>>
    %526 = vector.broadcast %525 : f32 to vector<1x128xf32>
    %527 = arith.mulf %517, %526 : vector<1x128xf32>
    %528 = arith.addf %524, %527 : vector<1x128xf32>
    %c0_273 = arith.constant 0 : index
    %c2_274 = arith.constant 2 : index
    %529 = memref.load %arg2[%c0_273, %c2_274] : memref<5x4xf32, #tpu.memory_space<smem>>
    %530 = vector.broadcast %529 : f32 to vector<1x128xf32>
    %531 = arith.mulf %519, %530 : vector<1x128xf32>
    %532 = arith.addf %528, %531 : vector<1x128xf32>
    %c0_275 = arith.constant 0 : index
    %c3_276 = arith.constant 3 : index
    %533 = memref.load %arg2[%c0_275, %c3_276] : memref<5x4xf32, #tpu.memory_space<smem>>
    %534 = vector.broadcast %533 : f32 to vector<1x128xf32>
    %535 = arith.mulf %521, %534 : vector<1x128xf32>
    %536 = arith.addf %532, %535 : vector<1x128xf32>
    %c4_277 = arith.constant 4 : index
    %c0_278 = arith.constant 0 : index
    %537 = memref.load %arg3[%c4_277, %c0_278] : memref<5x5xf32, #tpu.memory_space<smem>>
    %538 = vector.broadcast %537 : f32 to vector<1x128xf32>
    %539 = arith.addf %536, %538 : vector<1x128xf32>
    %cst_279 = arith.constant 0.000000e+00 : f32
    %540 = vector.broadcast %cst_279 : f32 to vector<1x128xf32>
    %541 = arith.maximumf %539, %540 : vector<1x128xf32>
    %c1_280 = arith.constant 1 : index
    %c0_281 = arith.constant 0 : index
    %542 = memref.load %arg2[%c1_280, %c0_281] : memref<5x4xf32, #tpu.memory_space<smem>>
    %543 = vector.broadcast %542 : f32 to vector<1x128xf32>
    %544 = arith.mulf %515, %543 : vector<1x128xf32>
    %c1_282 = arith.constant 1 : index
    %c1_283 = arith.constant 1 : index
    %545 = memref.load %arg2[%c1_282, %c1_283] : memref<5x4xf32, #tpu.memory_space<smem>>
    %546 = vector.broadcast %545 : f32 to vector<1x128xf32>
    %547 = arith.mulf %517, %546 : vector<1x128xf32>
    %548 = arith.addf %544, %547 : vector<1x128xf32>
    %c1_284 = arith.constant 1 : index
    %c2_285 = arith.constant 2 : index
    %549 = memref.load %arg2[%c1_284, %c2_285] : memref<5x4xf32, #tpu.memory_space<smem>>
    %550 = vector.broadcast %549 : f32 to vector<1x128xf32>
    %551 = arith.mulf %519, %550 : vector<1x128xf32>
    %552 = arith.addf %548, %551 : vector<1x128xf32>
    %c1_286 = arith.constant 1 : index
    %c3_287 = arith.constant 3 : index
    %553 = memref.load %arg2[%c1_286, %c3_287] : memref<5x4xf32, #tpu.memory_space<smem>>
    %554 = vector.broadcast %553 : f32 to vector<1x128xf32>
    %555 = arith.mulf %521, %554 : vector<1x128xf32>
    %556 = arith.addf %552, %555 : vector<1x128xf32>
    %c4_288 = arith.constant 4 : index
    %c1_289 = arith.constant 1 : index
    %557 = memref.load %arg3[%c4_288, %c1_289] : memref<5x5xf32, #tpu.memory_space<smem>>
    %558 = vector.broadcast %557 : f32 to vector<1x128xf32>
    %559 = arith.addf %556, %558 : vector<1x128xf32>
    %cst_290 = arith.constant 0.000000e+00 : f32
    %560 = vector.broadcast %cst_290 : f32 to vector<1x128xf32>
    %561 = arith.maximumf %559, %560 : vector<1x128xf32>
    %562 = arith.addf %541, %561 : vector<1x128xf32>
    %c2_291 = arith.constant 2 : index
    %c0_292 = arith.constant 0 : index
    %563 = memref.load %arg2[%c2_291, %c0_292] : memref<5x4xf32, #tpu.memory_space<smem>>
    %564 = vector.broadcast %563 : f32 to vector<1x128xf32>
    %565 = arith.mulf %515, %564 : vector<1x128xf32>
    %c2_293 = arith.constant 2 : index
    %c1_294 = arith.constant 1 : index
    %566 = memref.load %arg2[%c2_293, %c1_294] : memref<5x4xf32, #tpu.memory_space<smem>>
    %567 = vector.broadcast %566 : f32 to vector<1x128xf32>
    %568 = arith.mulf %517, %567 : vector<1x128xf32>
    %569 = arith.addf %565, %568 : vector<1x128xf32>
    %c2_295 = arith.constant 2 : index
    %c2_296 = arith.constant 2 : index
    %570 = memref.load %arg2[%c2_295, %c2_296] : memref<5x4xf32, #tpu.memory_space<smem>>
    %571 = vector.broadcast %570 : f32 to vector<1x128xf32>
    %572 = arith.mulf %519, %571 : vector<1x128xf32>
    %573 = arith.addf %569, %572 : vector<1x128xf32>
    %c2_297 = arith.constant 2 : index
    %c3_298 = arith.constant 3 : index
    %574 = memref.load %arg2[%c2_297, %c3_298] : memref<5x4xf32, #tpu.memory_space<smem>>
    %575 = vector.broadcast %574 : f32 to vector<1x128xf32>
    %576 = arith.mulf %521, %575 : vector<1x128xf32>
    %577 = arith.addf %573, %576 : vector<1x128xf32>
    %c4_299 = arith.constant 4 : index
    %c2_300 = arith.constant 2 : index
    %578 = memref.load %arg3[%c4_299, %c2_300] : memref<5x5xf32, #tpu.memory_space<smem>>
    %579 = vector.broadcast %578 : f32 to vector<1x128xf32>
    %580 = arith.addf %577, %579 : vector<1x128xf32>
    %cst_301 = arith.constant 0.000000e+00 : f32
    %581 = vector.broadcast %cst_301 : f32 to vector<1x128xf32>
    %582 = arith.maximumf %580, %581 : vector<1x128xf32>
    %583 = arith.addf %562, %582 : vector<1x128xf32>
    %c3_302 = arith.constant 3 : index
    %c0_303 = arith.constant 0 : index
    %584 = memref.load %arg2[%c3_302, %c0_303] : memref<5x4xf32, #tpu.memory_space<smem>>
    %585 = vector.broadcast %584 : f32 to vector<1x128xf32>
    %586 = arith.mulf %515, %585 : vector<1x128xf32>
    %c3_304 = arith.constant 3 : index
    %c1_305 = arith.constant 1 : index
    %587 = memref.load %arg2[%c3_304, %c1_305] : memref<5x4xf32, #tpu.memory_space<smem>>
    %588 = vector.broadcast %587 : f32 to vector<1x128xf32>
    %589 = arith.mulf %517, %588 : vector<1x128xf32>
    %590 = arith.addf %586, %589 : vector<1x128xf32>
    %c3_306 = arith.constant 3 : index
    %c2_307 = arith.constant 2 : index
    %591 = memref.load %arg2[%c3_306, %c2_307] : memref<5x4xf32, #tpu.memory_space<smem>>
    %592 = vector.broadcast %591 : f32 to vector<1x128xf32>
    %593 = arith.mulf %519, %592 : vector<1x128xf32>
    %594 = arith.addf %590, %593 : vector<1x128xf32>
    %c3_308 = arith.constant 3 : index
    %c3_309 = arith.constant 3 : index
    %595 = memref.load %arg2[%c3_308, %c3_309] : memref<5x4xf32, #tpu.memory_space<smem>>
    %596 = vector.broadcast %595 : f32 to vector<1x128xf32>
    %597 = arith.mulf %521, %596 : vector<1x128xf32>
    %598 = arith.addf %594, %597 : vector<1x128xf32>
    %c4_310 = arith.constant 4 : index
    %c3_311 = arith.constant 3 : index
    %599 = memref.load %arg3[%c4_310, %c3_311] : memref<5x5xf32, #tpu.memory_space<smem>>
    %600 = vector.broadcast %599 : f32 to vector<1x128xf32>
    %601 = arith.addf %598, %600 : vector<1x128xf32>
    %cst_312 = arith.constant 0.000000e+00 : f32
    %602 = vector.broadcast %cst_312 : f32 to vector<1x128xf32>
    %603 = arith.maximumf %601, %602 : vector<1x128xf32>
    %604 = arith.addf %583, %603 : vector<1x128xf32>
    %c4_313 = arith.constant 4 : index
    %c0_314 = arith.constant 0 : index
    %605 = memref.load %arg2[%c4_313, %c0_314] : memref<5x4xf32, #tpu.memory_space<smem>>
    %606 = vector.broadcast %605 : f32 to vector<1x128xf32>
    %607 = arith.mulf %515, %606 : vector<1x128xf32>
    %c4_315 = arith.constant 4 : index
    %c1_316 = arith.constant 1 : index
    %608 = memref.load %arg2[%c4_315, %c1_316] : memref<5x4xf32, #tpu.memory_space<smem>>
    %609 = vector.broadcast %608 : f32 to vector<1x128xf32>
    %610 = arith.mulf %517, %609 : vector<1x128xf32>
    %611 = arith.addf %607, %610 : vector<1x128xf32>
    %c4_317 = arith.constant 4 : index
    %c2_318 = arith.constant 2 : index
    %612 = memref.load %arg2[%c4_317, %c2_318] : memref<5x4xf32, #tpu.memory_space<smem>>
    %613 = vector.broadcast %612 : f32 to vector<1x128xf32>
    %614 = arith.mulf %519, %613 : vector<1x128xf32>
    %615 = arith.addf %611, %614 : vector<1x128xf32>
    %c4_319 = arith.constant 4 : index
    %c3_320 = arith.constant 3 : index
    %616 = memref.load %arg2[%c4_319, %c3_320] : memref<5x4xf32, #tpu.memory_space<smem>>
    %617 = vector.broadcast %616 : f32 to vector<1x128xf32>
    %618 = arith.mulf %521, %617 : vector<1x128xf32>
    %619 = arith.addf %615, %618 : vector<1x128xf32>
    %c4_321 = arith.constant 4 : index
    %c4_322 = arith.constant 4 : index
    %620 = memref.load %arg3[%c4_321, %c4_322] : memref<5x5xf32, #tpu.memory_space<smem>>
    %621 = vector.broadcast %620 : f32 to vector<1x128xf32>
    %622 = arith.addf %619, %621 : vector<1x128xf32>
    %cst_323 = arith.constant 0.000000e+00 : f32
    %623 = vector.broadcast %cst_323 : f32 to vector<1x128xf32>
    %624 = arith.maximumf %622, %623 : vector<1x128xf32>
    %625 = arith.addf %604, %624 : vector<1x128xf32>
    %626 = arith.cmpf ogt, %625, %511 : vector<1x128xf32>
    %627 = arith.cmpf ogt, %625, %507 : vector<1x128xf32>
    %628 = arith.cmpf ogt, %625, %502 : vector<1x128xf32>
    %629 = arith.select %628, %625, %502 : vector<1x128xi1>, vector<1x128xf32>
    %630 = arith.select %627, %507, %629 : vector<1x128xi1>, vector<1x128xf32>
    %c4_i32 = arith.constant 4 : i32
    %631 = vector.broadcast %c4_i32 : i32 to vector<1x128xi32>
    %632 = arith.select %628, %631, %505 : vector<1x128xi1>, vector<1x128xi32>
    %633 = arith.select %627, %510, %632 : vector<1x128xi1>, vector<1x128xi32>
    %634 = arith.select %627, %625, %507 : vector<1x128xi1>, vector<1x128xf32>
    %635 = arith.select %626, %511, %634 : vector<1x128xi1>, vector<1x128xf32>
    %c4_i32_324 = arith.constant 4 : i32
    %636 = vector.broadcast %c4_i32_324 : i32 to vector<1x128xi32>
    %637 = arith.select %627, %636, %510 : vector<1x128xi1>, vector<1x128xi32>
    %638 = arith.select %626, %513, %637 : vector<1x128xi1>, vector<1x128xi32>
    %639 = arith.select %626, %625, %511 : vector<1x128xi1>, vector<1x128xf32>
    %c4_i32_325 = arith.constant 4 : i32
    %640 = vector.broadcast %c4_i32_325 : i32 to vector<1x128xi32>
    %641 = arith.select %626, %640, %513 : vector<1x128xi1>, vector<1x128xi32>
    %c0_326 = arith.constant 0 : index
    %c0_327 = arith.constant 0 : index
    %c0_328 = arith.constant 0 : index
    %642 = vector.load %arg4[%c0_326, %c0_327, %c0_328] : memref<3x1x128xf32, #tpu.memory_space<vmem>>, vector<1x1x128xf32>
    %643 = vector.shape_cast %642 : vector<1x1x128xf32> to vector<1x128xf32>
    %644 = vector.shape_cast %639 : vector<1x128xf32> to vector<1x1x128xf32>
    tpu.vector_store %arg4[%c0_326, %c0_327, %c0_328], %644 {strides = array<i32>} : memref<3x1x128xf32, #tpu.memory_space<vmem>>, vector<1x1x128xf32>,
    %c1_329 = arith.constant 1 : index
    %c0_330 = arith.constant 0 : index
    %c0_331 = arith.constant 0 : index
    %645 = vector.load %arg4[%c1_329, %c0_330, %c0_331] : memref<3x1x128xf32, #tpu.memory_space<vmem>>, vector<1x1x128xf32>
    %646 = vector.shape_cast %645 : vector<1x1x128xf32> to vector<1x128xf32>
    %647 = vector.shape_cast %635 : vector<1x128xf32> to vector<1x1x128xf32>
    tpu.vector_store %arg4[%c1_329, %c0_330, %c0_331], %647 {strides = array<i32>} : memref<3x1x128xf32, #tpu.memory_space<vmem>>, vector<1x1x128xf32>,
    %c2_332 = arith.constant 2 : index
    %c0_333 = arith.constant 0 : index
    %c0_334 = arith.constant 0 : index
    %648 = vector.load %arg4[%c2_332, %c0_333, %c0_334] : memref<3x1x128xf32, #tpu.memory_space<vmem>>, vector<1x1x128xf32>
    %649 = vector.shape_cast %648 : vector<1x1x128xf32> to vector<1x128xf32>
    %650 = vector.shape_cast %630 : vector<1x128xf32> to vector<1x1x128xf32>
    tpu.vector_store %arg4[%c2_332, %c0_333, %c0_334], %650 {strides = array<i32>} : memref<3x1x128xf32, #tpu.memory_space<vmem>>, vector<1x1x128xf32>,
    %c0_335 = arith.constant 0 : index
    %c0_336 = arith.constant 0 : index
    %c0_337 = arith.constant 0 : index
    %651 = vector.load %arg5[%c0_335, %c0_336, %c0_337] : memref<3x1x128xi32, #tpu.memory_space<vmem>>, vector<1x1x128xi32>
    %652 = vector.shape_cast %651 : vector<1x1x128xi32> to vector<1x128xi32>
    %653 = vector.shape_cast %641 : vector<1x128xi32> to vector<1x1x128xi32>
    tpu.vector_store %arg5[%c0_335, %c0_336, %c0_337], %653 {strides = array<i32>} : memref<3x1x128xi32, #tpu.memory_space<vmem>>, vector<1x1x128xi32>,
    %c1_338 = arith.constant 1 : index
    %c0_339 = arith.constant 0 : index
    %c0_340 = arith.constant 0 : index
    %654 = vector.load %arg5[%c1_338, %c0_339, %c0_340] : memref<3x1x128xi32, #tpu.memory_space<vmem>>, vector<1x1x128xi32>
    %655 = vector.shape_cast %654 : vector<1x1x128xi32> to vector<1x128xi32>
    %656 = vector.shape_cast %638 : vector<1x128xi32> to vector<1x1x128xi32>
    tpu.vector_store %arg5[%c1_338, %c0_339, %c0_340], %656 {strides = array<i32>} : memref<3x1x128xi32, #tpu.memory_space<vmem>>, vector<1x1x128xi32>,
    %c2_341 = arith.constant 2 : index
    %c0_342 = arith.constant 0 : index
    %c0_343 = arith.constant 0 : index
    %657 = vector.load %arg5[%c2_341, %c0_342, %c0_343] : memref<3x1x128xi32, #tpu.memory_space<vmem>>, vector<1x1x128xi32>
    %658 = vector.shape_cast %657 : vector<1x1x128xi32> to vector<1x128xi32>
    %659 = vector.shape_cast %633 : vector<1x128xi32> to vector<1x1x128xi32>
    tpu.vector_store %arg5[%c2_341, %c0_342, %c0_343], %659 {strides = array<i32>} : memref<3x1x128xi32, #tpu.memory_space<vmem>>, vector<1x1x128xi32>,
    return
  }
  func.func @transform_0(%arg0: i32) -> (i32, i32, i32) {
    %c0_i32 = arith.constant 0 : i32
    %c0_i32_0 = arith.constant 0 : i32
    %c0_i32_1 = arith.constant 0 : i32
    return %c0_i32, %arg0, %c0_i32_0 : i32, i32, i32
  }
  func.func @transform_1(%arg0: i32) -> (i32, i32) {
    %c0_i32 = arith.constant 0 : i32
    %c0_i32_0 = arith.constant 0 : i32
    %c0_i32_1 = arith.constant 0 : i32
    return %c0_i32, %c0_i32_0 : i32, i32
  }
  func.func @transform_2(%arg0: i32) -> (i32, i32) {
    %c0_i32 = arith.constant 0 : i32
    %c0_i32_0 = arith.constant 0 : i32
    %c0_i32_1 = arith.constant 0 : i32
    return %c0_i32, %c0_i32_0 : i32, i32
  }
  func.func @transform_3(%arg0: i32) -> (i32, i32, i32) {
    %c0_i32 = arith.constant 0 : i32
    %c0_i32_0 = arith.constant 0 : i32
    %c0_i32_1 = arith.constant 0 : i32
    return %c0_i32, %arg0, %c0_i32_0 : i32, i32, i32
  }
  func.func @transform_4(%arg0: i32) -> (i32, i32, i32) {
    %c0_i32 = arith.constant 0 : i32
    %c0_i32_0 = arith.constant 0 : i32
    %c0_i32_1 = arith.constant 0 : i32
    return %c0_i32, %arg0, %c0_i32_0 : i32, i32, i32
  }
}

</mosaic_0001>

<llo_original>
// kernel: mymodule_forward.1
$region0: #{mymodule_forward.1}
  #allocation0 [shape = 'u32[]', space=smem, size = 0x4, offset = 0x4, fixed_abs, tag = 'smem constant byte address 0x4 - core index']
  #allocation1 [shape = 'u32[72,128]{1,0:T(1,128)}', space=vmem, size = 0x9000, scoped, tag = 'internal scratch']
  %s0 = inlined_call_operand.vmem [shape: f32[20,1,128], index: 0, kind: input, shape index: {}]
  %s1 = inlined_call_operand.vmem [shape: f32[5,4], index: 1, kind: input, shape index: {}]
  %s2 = inlined_call_operand.vmem [shape: f32[5,5], index: 2, kind: input, shape index: {}]
  %s3 = inlined_call_operand.vmem [shape: f32[3,1,128], index: 3, kind: output, shape index: {0}]
  %s4 = inlined_call_operand.vmem [shape: s32[3,1,128], index: 4, kind: output, shape index: {1}]
  %5 = xla_tuple %s3, %s4
  %s6 = sld [smem:[#allocation0]]
  $region38: #{mymodule_forward.1} parent=0
    _
  %s8 = ssub.s32 1, %s6
  %s9 = scalar_select 0, %s8, %s6
  $region1: #{mymodule_forward.1} parent=0
    #allocation2 [shape = 'u8[4096]{0}', space=smem, size = 0x1000, scoped, tag = 'input window, operand 1, single buffered']
    #allocation3 [shape = 's32[1]{0}', space=sflag, size = 0x4, scoped, tag = 'scoped memory for mymodule_forward.1']
    #allocation4 [shape = 'u8[4096]{0}', space=smem, size = 0x1000, scoped, tag = 'input window, operand 2, single buffered']
    #allocation5 [shape = 's32[1]{0}', space=sflag, size = 0x4, scoped, tag = 'scoped memory for mymodule_forward.1']
    %10 = vsyncpa [#allocation3], 0
    %11 = vsyncpa [#allocation5], 0
    // Predicated region
    $region2: #{mymodule_forward.1} parent=1 // pred_check
      _
    $region3: #{mymodule_forward.1} parent=1 // pred_check_branch
      %13 = sbr.rel (0) target = $region5
    $region4: #{mymodule_forward.1} parent=1 // pred_region
      _
    $region5: #{mymodule_forward.1} parent=1 // pred_fallthru
      _
    // Predicated region
    $region6: #{mymodule_forward.1} parent=1 // pred_check
      _
    $region7: #{mymodule_forward.1} parent=1 // pred_check_branch
      %15 = sbr.rel (0) target = $region9
    $region8: #{mymodule_forward.1} parent=1 // pred_region
      %17 = vsyncadd [#allocation3], 0
      %s19 = sshll.u32 %s1, 4
      %s20 = int_to_ptr.vmem [resolvable:$true] %s19
      %22 = dma.vmem_to_smem %s20, 128, [#allocation2], [#allocation3]
    $region9: #{mymodule_forward.1} parent=1 // pred_fallthru
      _
    // Predicated region
    $region10: #{mymodule_forward.1} parent=1 // pred_check
      _
    $region11: #{mymodule_forward.1} parent=1 // pred_check_branch
      %24 = sbr.rel (0) target = $region13
    $region12: #{mymodule_forward.1} parent=1 // pred_region
      %26 = vsyncadd [#allocation5], 0
      %s28 = sshll.u32 %s2, 4
      %s29 = int_to_ptr.vmem [resolvable:$true] %s28
      %31 = dma.vmem_to_smem %s29, 128, [#allocation4], [#allocation5]
    $region13: #{mymodule_forward.1} parent=1 // pred_fallthru
      _
    // Predicated region
    $region14: #{mymodule_forward.1} parent=1 // pred_check
      _
    $region15: #{mymodule_forward.1} parent=1 // pred_check_branch
      %33 = sbr.rel (0) target = $region17
    $region16: #{mymodule_forward.1} parent=1 // pred_region
      %35 = dma.done [#allocation3], 128
    $region17: #{mymodule_forward.1} parent=1 // pred_fallthru
      _
    // Predicated region
    $region18: #{mymodule_forward.1} parent=1 // pred_check
      _
    $region19: #{mymodule_forward.1} parent=1 // pred_check_branch
      %37 = sbr.rel (0) target = $region21
    $region20: #{mymodule_forward.1} parent=1 // pred_region
      %39 = dma.done [#allocation5], 128
    $region21: #{mymodule_forward.1} parent=1 // pred_fallthru
      _
    %40 = sfence
    %v41 = vld [vmem:[%s0] sm:$0x1]
    %s42 = scalar_lea.vmem %s0, 1
    %v43 = vld [vmem:[%s42] sm:$0x1]
    %s44 = scalar_lea.vmem %s0, 2
    %v45 = vld [vmem:[%s44] sm:$0x1]
    %s46 = scalar_lea.vmem %s0, 3
    %v47 = vld [vmem:[%s46] sm:$0x1]
    %s48 = sld [smem:[#allocation2]]
    %v49 = vstv %s48
    %v50 = vmul.f32 %v41, %v49
    %s51 = sld [smem:[#allocation2 + $0x1]]
    %v52 = vstv %s51
    %v53 = vmul.f32 %v43, %v52
    %v54 = vadd.f32 %v50, %v53
    %s55 = sld [smem:[#allocation2 + $0x2]]
    %v56 = vstv %s55
    %v57 = vmul.f32 %v45, %v56
    %v58 = vadd.f32 %v54, %v57
    %s59 = sld [smem:[#allocation2 + $0x3]]
    %v60 = vstv %s59
    %v61 = vmul.f32 %v47, %v60
    %v62 = vadd.f32 %v58, %v61
    %s63 = sld [smem:[#allocation4]]
    %v64 = vstv %s63
    %v65 = vadd.f32 %v62, %v64
    %v66 = vmax.f32 %v65, 0.0
    %s67 = sld [smem:[#allocation2 + $0x80]]
    %v68 = vstv %s67
    %v69 = vmul.f32 %v41, %v68
    %s70 = sld [smem:[#allocation2 + $0x81]]
    %v71 = vstv %s70
    %v72 = vmul.f32 %v43, %v71
    %v73 = vadd.f32 %v69, %v72
    %s74 = sld [smem:[#allocation2 + $0x82]]
    %v75 = vstv %s74
    %v76 = vmul.f32 %v45, %v75
    %v77 = vadd.f32 %v73, %v76
    %s78 = sld [smem:[#allocation2 + $0x83]]
    %v79 = vstv %s78
    %v80 = vmul.f32 %v47, %v79
    %v81 = vadd.f32 %v77, %v80
    %s82 = sld [smem:[#allocation4 + $0x1]]
    %v83 = vstv %s82
    %v84 = vadd.f32 %v81, %v83
    %v85 = vmax.f32 %v84, 0.0
    %v86 = vadd.f32 %v66, %v85
    %s87 = sld [smem:[#allocation2 + $0x100]]
    %v88 = vstv %s87
    %v89 = vmul.f32 %v41, %v88
    %s90 = sld [smem:[#allocation2 + $0x101]]
    %v91 = vstv %s90
    %v92 = vmul.f32 %v43, %v91
    %v93 = vadd.f32 %v89, %v92
    %s94 = sld [smem:[#allocation2 + $0x102]]
    %v95 = vstv %s94
    %v96 = vmul.f32 %v45, %v95
    %v97 = vadd.f32 %v93, %v96
    %s98 = sld [smem:[#allocation2 + $0x103]]
    %v99 = vstv %s98
    %v100 = vmul.f32 %v47, %v99
    %v101 = vadd.f32 %v97, %v100
    %s102 = sld [smem:[#allocation4 + $0x2]]
    %v103 = vstv %s102
    %v104 = vadd.f32 %v101, %v103
    %v105 = vmax.f32 %v104, 0.0
    %v106 = vadd.f32 %v86, %v105
    %s107 = sld [smem:[#allocation2 + $0x180]]
    %v108 = vstv %s107
    %v109 = vmul.f32 %v41, %v108
    %s110 = sld [smem:[#allocation2 + $0x181]]
    %v111 = vstv %s110
    %v112 = vmul.f32 %v43, %v111
    %v113 = vadd.f32 %v109, %v112
    %s114 = sld [smem:[#allocation2 + $0x182]]
    %v115 = vstv %s114
    %v116 = vmul.f32 %v45, %v115
    %v117 = vadd.f32 %v113, %v116
    %s118 = sld [smem:[#allocation2 + $0x183]]
    %v119 = vstv %s118
    %v120 = vmul.f32 %v47, %v119
    %v121 = vadd.f32 %v117, %v120
    %s122 = sld [smem:[#allocation4 + $0x3]]
    %v123 = vstv %s122
    %v124 = vadd.f32 %v121, %v123
    %v125 = vmax.f32 %v124, 0.0
    %v126 = vadd.f32 %v106, %v125
    %s127 = sld [smem:[#allocation2 + $0x200]]
    %v128 = vstv %s127
    %v129 = vmul.f32 %v41, %v128
    %s130 = sld [smem:[#allocation2 + $0x201]]
    %v131 = vstv %s130
    %v132 = vmul.f32 %v43, %v131
    %v133 = vadd.f32 %v129, %v132
    %s134 = sld [smem:[#allocation2 + $0x202]]
    %v135 = vstv %s134
    %v136 = vmul.f32 %v45, %v135
    %v137 = vadd.f32 %v133, %v136
    %s138 = sld [smem:[#allocation2 + $0x203]]
    %v139 = vstv %s138
    %v140 = vmul.f32 %v47, %v139
    %v141 = vadd.f32 %v137, %v140
    %s142 = sld [smem:[#allocation4 + $0x4]]
    %v143 = vstv %s142
    %v144 = vadd.f32 %v141, %v143
    %v145 = vmax.f32 %v144, 0.0
    %v146 = vadd.f32 %v126, %v145
    %vm147 = vcmp.gt.f32.partialorder %v146, -3e+38
    %v148 = vsel %vm147, %v146, -3e+38
    %s149 = scalar_lea.vmem %s0, 4
    %v150 = vld [vmem:[%s149] sm:$0x1]
    %s151 = scalar_lea.vmem %s0, 5
    %v152 = vld [vmem:[%s151] sm:$0x1]
    %s153 = scalar_lea.vmem %s0, 6
    %v154 = vld [vmem:[%s153] sm:$0x1]
    %s155 = scalar_lea.vmem %s0, 7
    %v156 = vld [vmem:[%s155] sm:$0x1]
    %v157 = vmul.f32 %v150, %v49
    %v158 = vmul.f32 %v152, %v52
    %v159 = vadd.f32 %v157, %v158
    %v160 = vmul.f32 %v154, %v56
    %v161 = vadd.f32 %v159, %v160
    %v162 = vmul.f32 %v156, %v60
    %v163 = vadd.f32 %v161, %v162
    %s164 = sld [smem:[#allocation4 + $0x80]]
    %v165 = vstv %s164
    %v166 = vadd.f32 %v163, %v165
    %v167 = vmax.f32 %v166, 0.0
    %v168 = vmul.f32 %v150, %v68
    %v169 = vmul.f32 %v152, %v71
    %v170 = vadd.f32 %v168, %v169
    %v171 = vmul.f32 %v154, %v75
    %v172 = vadd.f32 %v170, %v171
    %v173 = vmul.f32 %v156, %v79
    %v174 = vadd.f32 %v172, %v173
    %s175 = sld [smem:[#allocation4 + $0x81]]
    %v176 = vstv %s175
    %v177 = vadd.f32 %v174, %v176
    %v178 = vmax.f32 %v177, 0.0
    %v179 = vadd.f32 %v167, %v178
    %v180 = vmul.f32 %v150, %v88
    %v181 = vmul.f32 %v152, %v91
    %v182 = vadd.f32 %v180, %v181
    %v183 = vmul.f32 %v154, %v95
    %v184 = vadd.f32 %v182, %v183
    %v185 = vmul.f32 %v156, %v99
    %v186 = vadd.f32 %v184, %v185
    %s187 = sld [smem:[#allocation4 + $0x82]]
    %v188 = vstv %s187
    %v189 = vadd.f32 %v186, %v188
    %v190 = vmax.f32 %v189, 0.0
    %v191 = vadd.f32 %v179, %v190
    %v192 = vmul.f32 %v150, %v108
    %v193 = vmul.f32 %v152, %v111
    %v194 = vadd.f32 %v192, %v193
    %v195 = vmul.f32 %v154, %v115
    %v196 = vadd.f32 %v194, %v195
    %v197 = vmul.f32 %v156, %v119
    %v198 = vadd.f32 %v196, %v197
    %s199 = sld [smem:[#allocation4 + $0x83]]
    %v200 = vstv %s199
    %v201 = vadd.f32 %v198, %v200
    %v202 = vmax.f32 %v201, 0.0
    %v203 = vadd.f32 %v191, %v202
    %v204 = vmul.f32 %v150, %v128
    %v205 = vmul.f32 %v152, %v131
    %v206 = vadd.f32 %v204, %v205
    %v207 = vmul.f32 %v154, %v135
    %v208 = vadd.f32 %v206, %v207
    %v209 = vmul.f32 %v156, %v139
    %v210 = vadd.f32 %v208, %v209
    %s211 = sld [smem:[#allocation4 + $0x84]]
    %v212 = vstv %s211
    %v213 = vadd.f32 %v210, %v212
    %v214 = vmax.f32 %v213, 0.0
    %v215 = vadd.f32 %v203, %v214
    %vm216 = vcmp.gt.f32.partialorder %v215, %v148
    %vm217 = vcmp.gt.f32.partialorder %v215, -3e+38
    %v218 = vsel %vm217, %v215, -3e+38
    %v219 = vsel %vm217, 1, 0
    %v220 = vsel %vm216, %v148, %v218
    %v221 = vsel %vm216, 0, %v219
    %v222 = vsel %vm216, %v215, %v148
    %v223 = vsel %vm216, 1, 0
    %s224 = scalar_lea.vmem %s0, 8
    %v225 = vld [vmem:[%s224] sm:$0x1]
    %s226 = scalar_lea.vmem %s0, 9
    %v227 = vld [vmem:[%s226] sm:$0x1]
    %s228 = scalar_lea.vmem %s0, 10
    %v229 = vld [vmem:[%s228] sm:$0x1]
    %s230 = scalar_lea.vmem %s0, 11
    %v231 = vld [vmem:[%s230] sm:$0x1]
    %v232 = vmul.f32 %v225, %v49
    %v233 = vmul.f32 %v227, %v52
    %v234 = vadd.f32 %v232, %v233
    %v235 = vmul.f32 %v229, %v56
    %v236 = vadd.f32 %v234, %v235
    %v237 = vmul.f32 %v231, %v60
    %v238 = vadd.f32 %v236, %v237
    %s239 = sld [smem:[#allocation4 + $0x100]]
    %v240 = vstv %s239
    %v241 = vadd.f32 %v238, %v240
    %v242 = vmax.f32 %v241, 0.0
    %v243 = vmul.f32 %v225, %v68
    %v244 = vmul.f32 %v227, %v71
    %v245 = vadd.f32 %v243, %v244
    %v246 = vmul.f32 %v229, %v75
    %v247 = vadd.f32 %v245, %v246
    %v248 = vmul.f32 %v231, %v79
    %v249 = vadd.f32 %v247, %v248
    %s250 = sld [smem:[#allocation4 + $0x101]]
    %v251 = vstv %s250
    %v252 = vadd.f32 %v249, %v251
    %v253 = vmax.f32 %v252, 0.0
    %v254 = vadd.f32 %v242, %v253
    %v255 = vmul.f32 %v225, %v88
    %v256 = vmul.f32 %v227, %v91
    %v257 = vadd.f32 %v255, %v256
    %v258 = vmul.f32 %v229, %v95
    %v259 = vadd.f32 %v257, %v258
    %v260 = vmul.f32 %v231, %v99
    %v261 = vadd.f32 %v259, %v260
    %s262 = sld [smem:[#allocation4 + $0x102]]
    %v263 = vstv %s262
    %v264 = vadd.f32 %v261, %v263
    %v265 = vmax.f32 %v264, 0.0
    %v266 = vadd.f32 %v254, %v265
    %v267 = vmul.f32 %v225, %v108
    %v268 = vmul.f32 %v227, %v111
    %v269 = vadd.f32 %v267, %v268
    %v270 = vmul.f32 %v229, %v115
    %v271 = vadd.f32 %v269, %v270
    %v272 = vmul.f32 %v231, %v119
    %v273 = vadd.f32 %v271, %v272
    %s274 = sld [smem:[#allocation4 + $0x103]]
    %v275 = vstv %s274
    %v276 = vadd.f32 %v273, %v275
    %v277 = vmax.f32 %v276, 0.0
    %v278 = vadd.f32 %v266, %v277
    %v279 = vmul.f32 %v225, %v128
    %v280 = vmul.f32 %v227, %v131
    %v281 = vadd.f32 %v279, %v280
    %v282 = vmul.f32 %v229, %v135
    %v283 = vadd.f32 %v281, %v282
    %v284 = vmul.f32 %v231, %v139
    %v285 = vadd.f32 %v283, %v284
    %s286 = sld [smem:[#allocation4 + $0x104]]
    %v287 = vstv %s286
    %v288 = vadd.f32 %v285, %v287
    %v289 = vmax.f32 %v288, 0.0
    %v290 = vadd.f32 %v278, %v289
    %vm291 = vcmp.gt.f32.partialorder %v290, %v222
    %vm292 = vcmp.gt.f32.partialorder %v290, %v220
    %vm293 = vcmp.gt.f32.partialorder %v290, -3e+38
    %v294 = vsel %vm293, %v290, -3e+38
    %v295 = vsel %vm292, %v220, %v294
    %v296 = vsel %vm293, 2, 0
    %v297 = vsel %vm292, %v221, %v296
    %v298 = vsel %vm292, %v290, %v220
    %v299 = vsel %vm291, %v222, %v298
    %v300 = vsel %vm292, 2, %v221
    %v301 = vsel %vm291, %v223, %v300
    %v302 = vsel %vm291, %v290, %v222
    %v303 = vsel %vm291, 2, %v223
    %s304 = scalar_lea.vmem %s0, 12
    %v305 = vld [vmem:[%s304] sm:$0x1]
    %s306 = scalar_lea.vmem %s0, 13
    %v307 = vld [vmem:[%s306] sm:$0x1]
    %s308 = scalar_lea.vmem %s0, 14
    %v309 = vld [vmem:[%s308] sm:$0x1]
    %s310 = scalar_lea.vmem %s0, 15
    %v311 = vld [vmem:[%s310] sm:$0x1]
    %v312 = vmul.f32 %v305, %v49
    %v313 = vmul.f32 %v307, %v52
    %v314 = vadd.f32 %v312, %v313
    %v315 = vmul.f32 %v309, %v56
    %v316 = vadd.f32 %v314, %v315
    %v317 = vmul.f32 %v311, %v60
    %v318 = vadd.f32 %v316, %v317
    %s319 = sld [smem:[#allocation4 + $0x180]]
    %v320 = vstv %s319
    %v321 = vadd.f32 %v318, %v320
    %v322 = vmax.f32 %v321, 0.0
    %v323 = vmul.f32 %v305, %v68
    %v324 = vmul.f32 %v307, %v71
    %v325 = vadd.f32 %v323, %v324
    %v326 = vmul.f32 %v309, %v75
    %v327 = vadd.f32 %v325, %v326
    %v328 = vmul.f32 %v311, %v79
    %v329 = vadd.f32 %v327, %v328
    %s330 = sld [smem:[#allocation4 + $0x181]]
    %v331 = vstv %s330
    %v332 = vadd.f32 %v329, %v331
    %v333 = vmax.f32 %v332, 0.0
    %v334 = vadd.f32 %v322, %v333
    %v335 = vmul.f32 %v305, %v88
    %v336 = vmul.f32 %v307, %v91
    %v337 = vadd.f32 %v335, %v336
    %v338 = vmul.f32 %v309, %v95
    %v339 = vadd.f32 %v337, %v338
    %v340 = vmul.f32 %v311, %v99
    %v341 = vadd.f32 %v339, %v340
    %s342 = sld [smem:[#allocation4 + $0x182]]
    %v343 = vstv %s342
    %v344 = vadd.f32 %v341, %v343
    %v345 = vmax.f32 %v344, 0.0
    %v346 = vadd.f32 %v334, %v345
    %v347 = vmul.f32 %v305, %v108
    %v348 = vmul.f32 %v307, %v111
    %v349 = vadd.f32 %v347, %v348
    %v350 = vmul.f32 %v309, %v115
    %v351 = vadd.f32 %v349, %v350
    %v352 = vmul.f32 %v311, %v119
    %v353 = vadd.f32 %v351, %v352
    %s354 = sld [smem:[#allocation4 + $0x183]]
    %v355 = vstv %s354
    %v356 = vadd.f32 %v353, %v355
    %v357 = vmax.f32 %v356, 0.0
    %v358 = vadd.f32 %v346, %v357
    %v359 = vmul.f32 %v305, %v128
    %v360 = vmul.f32 %v307, %v131
    %v361 = vadd.f32 %v359, %v360
    %v362 = vmul.f32 %v309, %v135
    %v363 = vadd.f32 %v361, %v362
    %v364 = vmul.f32 %v311, %v139
    %v365 = vadd.f32 %v363, %v364
    %s366 = sld [smem:[#allocation4 + $0x184]]
    %v367 = vstv %s366
    %v368 = vadd.f32 %v365, %v367
    %v369 = vmax.f32 %v368, 0.0
    %v370 = vadd.f32 %v358, %v369
    %vm371 = vcmp.gt.f32.partialorder %v370, %v302
    %vm372 = vcmp.gt.f32.partialorder %v370, %v299
    %vm373 = vcmp.gt.f32.partialorder %v370, %v295
    %v374 = vsel %vm373, %v370, %v295
    %v375 = vsel %vm372, %v299, %v374
    %v376 = vsel %vm373, 3, %v297
    %v377 = vsel %vm372, %v301, %v376
    %v378 = vsel %vm372, %v370, %v299
    %v379 = vsel %vm371, %v302, %v378
    %v380 = vsel %vm372, 3, %v301
    %v381 = vsel %vm371, %v303, %v380
    %v382 = vsel %vm371, %v370, %v302
    %v383 = vsel %vm371, 3, %v303
    %s384 = scalar_lea.vmem %s0, 16
    %v385 = vld [vmem:[%s384] sm:$0x1]
    %s386 = scalar_lea.vmem %s0, 17
    %v387 = vld [vmem:[%s386] sm:$0x1]
    %s388 = scalar_lea.vmem %s0, 18
    %v389 = vld [vmem:[%s388] sm:$0x1]
    %s390 = scalar_lea.vmem %s0, 19
    %v391 = vld [vmem:[%s390] sm:$0x1]
    %v392 = vmul.f32 %v385, %v49
    %v393 = vmul.f32 %v387, %v52
    %v394 = vadd.f32 %v392, %v393
    %v395 = vmul.f32 %v389, %v56
    %v396 = vadd.f32 %v394, %v395
    %v397 = vmul.f32 %v391, %v60
    %v398 = vadd.f32 %v396, %v397
    %s399 = sld [smem:[#allocation4 + $0x200]]
    %v400 = vstv %s399
    %v401 = vadd.f32 %v398, %v400
    %v402 = vmax.f32 %v401, 0.0
    %v403 = vmul.f32 %v385, %v68
    %v404 = vmul.f32 %v387, %v71
    %v405 = vadd.f32 %v403, %v404
    %v406 = vmul.f32 %v389, %v75
    %v407 = vadd.f32 %v405, %v406
    %v408 = vmul.f32 %v391, %v79
    %v409 = vadd.f32 %v407, %v408
    %s410 = sld [smem:[#allocation4 + $0x201]]
    %v411 = vstv %s410
    %v412 = vadd.f32 %v409, %v411
    %v413 = vmax.f32 %v412, 0.0
    %v414 = vadd.f32 %v402, %v413
    %v415 = vmul.f32 %v385, %v88
    %v416 = vmul.f32 %v387, %v91
    %v417 = vadd.f32 %v415, %v416
    %v418 = vmul.f32 %v389, %v95
    %v419 = vadd.f32 %v417, %v418
    %v420 = vmul.f32 %v391, %v99
    %v421 = vadd.f32 %v419, %v420
    %s422 = sld [smem:[#allocation4 + $0x202]]
    %v423 = vstv %s422
    %v424 = vadd.f32 %v421, %v423
    %v425 = vmax.f32 %v424, 0.0
    %v426 = vadd.f32 %v414, %v425
    %v427 = vmul.f32 %v385, %v108
    %v428 = vmul.f32 %v387, %v111
    %v429 = vadd.f32 %v427, %v428
    %v430 = vmul.f32 %v389, %v115
    %v431 = vadd.f32 %v429, %v430
    %v432 = vmul.f32 %v391, %v119
    %v433 = vadd.f32 %v431, %v432
    %s434 = sld [smem:[#allocation4 + $0x203]]
    %v435 = vstv %s434
    %v436 = vadd.f32 %v433, %v435
    %v437 = vmax.f32 %v436, 0.0
    %v438 = vadd.f32 %v426, %v437
    %v439 = vmul.f32 %v385, %v128
    %v440 = vmul.f32 %v387, %v131
    %v441 = vadd.f32 %v439, %v440
    %v442 = vmul.f32 %v389, %v135
    %v443 = vadd.f32 %v441, %v442
    %v444 = vmul.f32 %v391, %v139
    %v445 = vadd.f32 %v443, %v444
    %s446 = sld [smem:[#allocation4 + $0x204]]
    %v447 = vstv %s446
    %v448 = vadd.f32 %v445, %v447
    %v449 = vmax.f32 %v448, 0.0
    %v450 = vadd.f32 %v438, %v449
    %vm451 = vcmp.gt.f32.partialorder %v450, %v382
    %vm452 = vcmp.gt.f32.partialorder %v450, %v379
    %vm453 = vcmp.gt.f32.partialorder %v450, %v375
    %v454 = vsel %vm453, %v450, %v375
    %v455 = vsel %vm452, %v379, %v454
    %v456 = vsel %vm453, 4, %v377
    %v457 = vsel %vm452, %v381, %v456
    %v458 = vsel %vm452, %v450, %v379
    %v459 = vsel %vm451, %v382, %v458
    %v460 = vsel %vm452, 4, %v381
    %v461 = vsel %vm451, %v383, %v460
    %v462 = vsel %vm451, %v450, %v382
    %v463 = vsel %vm451, 4, %v383
    %464 = vst [vmem:[%s3] sm:$0x1] %v462
    %s465 = scalar_lea.vmem %s3, 1
    %466 = vst [vmem:[%s465] sm:$0x1] %v459
    %s467 = scalar_lea.vmem %s3, 2
    %468 = vst [vmem:[%s467] sm:$0x1] %v455
    %469 = vst [vmem:[%s4] sm:$0x1] %v463
    %s470 = scalar_lea.vmem %s4, 1
    %471 = vst [vmem:[%s470] sm:$0x1] %v461
    %s472 = scalar_lea.vmem %s4, 2
    %473 = vst [vmem:[%s472] sm:$0x1] %v457
    // Predicated region
    $region22: #{mymodule_forward.1} parent=1 // pred_check
      _
    $region23: #{mymodule_forward.1} parent=1 // pred_check_branch
      %475 = sbr.rel (0) target = $region25
    $region24: #{mymodule_forward.1} parent=1 // pred_region
      _
    $region25: #{mymodule_forward.1} parent=1 // pred_fallthru
      _
    // Predicated region
    $region26: #{mymodule_forward.1} parent=1 // pred_check
      _
    $region27: #{mymodule_forward.1} parent=1 // pred_check_branch
      %477 = sbr.rel (0) target = $region29
    $region28: #{mymodule_forward.1} parent=1 // pred_region
      _
    $region29: #{mymodule_forward.1} parent=1 // pred_fallthru
      _
    // Predicated region
    $region30: #{mymodule_forward.1} parent=1 // pred_check
      _
    $region31: #{mymodule_forward.1} parent=1 // pred_check_branch
      %479 = sbr.rel (0) target = $region33
    $region32: #{mymodule_forward.1} parent=1 // pred_region
      _
    $region33: #{mymodule_forward.1} parent=1 // pred_fallthru
      _
    // Predicated region
    $region34: #{mymodule_forward.1} parent=1 // pred_check
      _
    $region35: #{mymodule_forward.1} parent=1 // pred_check_branch
      %481 = sbr.rel (0) target = $region37
    $region36: #{mymodule_forward.1} parent=1 // pred_region
      _
    $region37: #{mymodule_forward.1} parent=1 // pred_fallthru
      _
    %482 = vsyncpa [#allocation3], 1
    %483 = vsyncpa [#allocation5], 1

</llo_original>
